<compile_context>
chip_gen: v5e
topology: v5e:2x2
jax: 0.10.0
libtpu: 0.0.40
codegen_flags: <defaults>
</compile_context>

<pallas_src>
import functools

import jax
import jax.numpy as jnp
from jax.experimental import pallas as pl
from jax.experimental.pallas import tpu as pltpu


# ----------------------------------------------------------------------------
# Kernel: one row-tile of
#   out = maybe_relu( im2col(x) @ W_folded + bias [+ shortcut] )
# ----------------------------------------------------------------------------
def _conv_bn_act_kernel(*refs, taps, n_src, Wo, apply_relu, residual_mode,
                        pad_in_kernel):
    """Positional refs layout:
         src planes (n_src)             [Hs, Ws, C]           (batch squeezed)
         w_ref                          [n_taps*C, Cout]      bf16 (BN folded)
         b_ref                          [1, Cout]             f32  (BN bias)
         res_ref        (identity)      [TR*Wo, Cout]         f32
         xs_ref, ws_ref (project)       [TR, Ws_sc, Cin_sc], [Cin_sc, Cout] bf16
         o_ref                          [TR*Wo, Cout]
         pad_scratch    (pad_in_kernel) [Hs+2, Ws+2, C]       f32
    """
    idx = 0
    src_refs = refs[idx:idx + n_src]; idx += n_src
    w_ref = refs[idx]; idx += 1
    b_ref = refs[idx]; idx += 1
    res_ref = xs_ref = ws_ref = None
    if residual_mode == "identity":
        res_ref = refs[idx]; idx += 1
    elif residual_mode == "project":
        xs_ref = refs[idx]; idx += 1
        ws_ref = refs[idx]; idx += 1
    o_ref = refs[idx]; idx += 1
    pad_scratch = refs[idx] if pad_in_kernel else None

    M, _ = o_ref.shape
    TR = M // Wo                       # output rows handled by this grid step
    r = pl.program_id(1)               # row-tile index

    if pad_in_kernel:
        # Build the zero-padded plane once per batch element; it stays resident
        # in VMEM across all row tiles of that batch element.
        @pl.when(r == 0)
        def _():
            x = src_refs[0][...]
            H, W, _ = x.shape
            pad_scratch[...] = jnp.zeros_like(pad_scratch)
            pad_scratch[1:H + 1, 1:W + 1, :] = x.astype(pad_scratch.dtype)
        planes = [pad_scratch]
    else:
        planes = list(src_refs)

    row0 = pl.multiple_of(r * TR, TR)

    # In-VMEM im2col: 9 shifted windows concatenated along channels -> a single
    # matmul with contraction depth n_taps*Cin (fills the MXU, no per-tap adds).
    pieces = []
    for (p, dh, dw) in taps:
        win = planes[p][pl.ds(row0 + dh, TR), pl.ds(dw, Wo), :]
        pieces.append(win.reshape(M, win.shape[-1]).astype(jnp.float32))
    lhs = pieces[0] if len(pieces) == 1 else jnp.concatenate(pieces, axis=-1)
    lhs = lhs.astype(jnp.bfloat16)

    acc = jnp.dot(lhs, w_ref[...], preferred_element_type=jnp.float32)
    acc = acc + b_ref[...]                                   # folded BN bias

    if residual_mode == "project":
        # Fused 1x1 projection shortcut: one more dot into the same accumulator.
        xs = xs_ref[:, :Wo, :].reshape(M, xs_ref.shape[-1]).astype(jnp.bfloat16)
        acc = acc + jnp.dot(xs, ws_ref[...], preferred_element_type=jnp.float32)
    elif residual_mode == "identity":
        acc = acc + res_ref[...].astype(jnp.float32)         # f32 skip connection

    if apply_relu:
        acc = jnp.maximum(acc, 0.0)
    o_ref[...] = acc.astype(o_ref.dtype)


def _pick_row_tile(Ho, Wo, target_rows=256):
    """Largest row tile TR (TR == Ho, or TR | Ho and TR % 8 == 0) keeping the
    f32 accumulator at TR*Wo <= target_rows rows (~32 vregs for Cout <= 128)."""
    if Ho * Wo <= target_rows:
        return Ho
    divisors = [d for d in range(8, Ho, 8) if Ho % d == 0]
    fitting = [d for d in divisors if d * Wo <= target_rows]
    if fitting:
        return max(fitting)
    return min(divisors) if divisors else Ho


def conv_bn_act(src_planes, w_flat, bias, *, taps, Ho, Wo, apply_relu,
                pad_in_kernel, out_dtype, residual=None, shortcut=None):
    """src_planes: list of [N, Hs, Ws, C] arrays (1 plane, padded in-kernel, for
    stride 1; 4 pre-padded polyphase planes for stride 2).
    w_flat: [n_taps*C, Cout] bf16 (BN scale folded).  bias: [1, Cout] f32.
    residual: [N, Ho*Wo, Cout] f32 (identity skip) or None.
    shortcut: (xs_src [N, >=Ho, >=Wo, Cin_sc] bf16, ws [Cin_sc, Cout] bf16) or None.
    Returns [N, Ho*Wo, Cout] of out_dtype."""
    N = src_planes[0].shape[0]
    Cout = w_flat.shape[-1]
    M_total = Ho * Wo
    TR = _pick_row_tile(Ho, Wo)
    R = Ho // TR
    MB = TR * Wo                      # output rows (of the flattened map) per step

    if residual is not None:
        residual_mode = "identity"
    elif shortcut is not None:
        residual_mode = "project"
    else:
        residual_mode = "none"

    kernel = functools.partial(
        _conv_bn_act_kernel, taps=taps, n_src=len(src_planes), Wo=Wo,
        apply_relu=apply_relu, residual_mode=residual_mode,
        pad_in_kernel=pad_in_kernel)

    # Source planes: full per-batch block, fetched only when n changes.
    in_specs = [pl.BlockSpec((None,) + p.shape[1:], lambda n, r: (n, 0, 0, 0))
                for p in src_planes]
    in_specs += [pl.BlockSpec(w_flat.shape, lambda n, r: (0, 0)),
                 pl.BlockSpec(bias.shape, lambda n, r: (0, 0))]
    inputs = list(src_planes) + [w_flat, bias]

    if residual_mode == "identity":
        in_specs.append(pl.BlockSpec((None, MB, Cout), lambda n, r: (n, r, 0)))
        inputs.append(residual)
    elif residual_mode == "project":
        xs_src, ws = shortcut
        in_specs.append(pl.BlockSpec((None, TR) + xs_src.shape[2:],
                                     lambda n, r: (n, r, 0, 0)))
        in_specs.append(pl.BlockSpec(ws.shape, lambda n, r: (0, 0)))
        inputs += [xs_src, ws]

    scratch_shapes = []
    if pad_in_kernel:
        Hs, Ws, C = src_planes[0].shape[1:]
        scratch_shapes.append(pltpu.VMEM((Hs + 2, Ws + 2, C), jnp.float32))

    return pl.pallas_call(
        kernel,
        out_shape=jax.ShapeDtypeStruct((N, M_total, Cout), out_dtype),
        grid=(N, R),
        in_specs=in_specs,
        out_specs=pl.BlockSpec((None, MB, Cout), lambda n, r: (n, r, 0)),
        scratch_shapes=scratch_shapes,
        compiler_params=pltpu.CompilerParams(
            # Row axis must be sequential when the per-batch pad scratch is
            # rebuilt at r == 0; otherwise both axes are megacore-shardable.
            dimension_semantics=("parallel",
                                 "arbitrary" if pad_in_kernel else "parallel"),
            vmem_limit_bytes=32 * 1024 * 1024),
    )(*inputs)


# ----------------------------------------------------------------------------
# Glue: BN folding, tap/phase preparation.
# ----------------------------------------------------------------------------
def fold_conv_bn(w, gamma, beta, mean, var, eps=1e-5):
    """PyTorch conv weight [Cout, Cin, kh, kw] + BN stats ->
       (bf16 flattened weight [kh*kw*Cin, Cout] with scale folded, f32 bias [1, Cout])."""
    Cout, Cin, kh, kw = w.shape
    scale = gamma / jnp.sqrt(var + eps)                       # [Cout]
    bias = beta - mean * scale                                # [Cout]
    w_flat = jnp.transpose(w, (2, 3, 1, 0)).reshape(kh * kw * Cin, Cout)
    w_flat = w_flat * scale[None, :]
    return w_flat.astype(jnp.bfloat16), bias.reshape(1, Cout).astype(jnp.float32)


# ----------------------------------------------------------------------------
# BasicBlock forward
# ----------------------------------------------------------------------------
def basic_block_forward_nhwc(x, params, stride):
    """x: [N, H, W, Cin] -> [N, Ho, Wo, Cout] (NHWC-native; chain this in a full net)."""
    N, H, W, Cin = x.shape
    Cout = params["conv1_w"].shape[0]
    assert H % stride == 0 and W % stride == 0
    Ho, Wo = H // stride, W // stride

    w1, b1 = fold_conv_bn(params["conv1_w"], params["bn1_gamma"], params["bn1_beta"],
                          params["bn1_mean"], params["bn1_var"])
    w2, b2 = fold_conv_bn(params["conv2_w"], params["bn2_gamma"], params["bn2_beta"],
                          params["bn2_mean"], params["bn2_var"])

    # --- conv1 + bn1 + relu ---
    if stride == 1:
        src1 = [x]                                # halo built in-kernel (no jnp.pad)
        taps1 = [(0, kh, kw) for kh in range(3) for kw in range(3)]
        pad1 = True
    elif stride == 2:
        # Polyphase split of the padded input: every in-kernel window read stays
        # a contiguous slice.  (See TODO at top about moving this in-kernel.)
        xp = jnp.pad(x.astype(jnp.bfloat16), ((0, 0), (1, 1), (1, 1), (0, 0)))
        src1 = [xp[:, a::2, b::2, :] for a in range(2) for b in range(2)]
        taps1 = [((kh % 2) * 2 + (kw % 2), kh // 2, kw // 2)
                 for kh in range(3) for kw in range(3)]
        pad1 = False
    else:
        raise NotImplementedError("only stride 1 or 2 supported")

    y1 = conv_bn_act(src1, w1, b1, taps=taps1, Ho=Ho, Wo=Wo, apply_relu=True,
                     pad_in_kernel=pad1, out_dtype=jnp.bfloat16)   # [N, Ho*Wo, Cout]

    # --- conv2 + bn2 + shortcut + relu (single fused kernel) ---
    taps2 = [(0, kh, kw) for kh in range(3) for kw in range(3)]
    y1_nhwc = y1.reshape(N, Ho, Wo, Cout)

    has_projection = (stride != 1) or (Cin != Cout)
    if has_projection:
        ws, bs = fold_conv_bn(params["sc_conv_w"], params["sc_bn_gamma"],
                              params["sc_bn_beta"], params["sc_bn_mean"],
                              params["sc_bn_var"])
        # Strided 1x1 shortcut input: for stride 2 reuse polyphase plane (1,1),
        # whose [:Ho, :Wo] slice is exactly x[::2, ::2] — no extra HBM copy.
        xs_src = src1[3] if stride == 2 else x.astype(jnp.bfloat16)
        out = conv_bn_act([y1_nhwc], w2, b2 + bs, taps=taps2, Ho=Ho, Wo=Wo,
                          apply_relu=True, pad_in_kernel=True,
                          out_dtype=jnp.float32, shortcut=(xs_src, ws))
    else:
        out = conv_bn_act([y1_nhwc], w2, b2, taps=taps2, Ho=Ho, Wo=Wo,
                          apply_relu=True, pad_in_kernel=True,
                          out_dtype=jnp.float32,
                          residual=x.reshape(N, Ho * Wo, Cout))   # f32 skip
    return out.reshape(N, Ho, Wo, Cout)


@functools.partial(jax.jit, static_argnums=2)
def basic_block_forward(x_nchw, params, stride):
    """NCHW wrapper matching the PyTorch module interface (transposes only at
    the network boundary; a full net should chain basic_block_forward_nhwc)."""
    x = jnp.transpose(x_nchw, (0, 2, 3, 1))
    out = basic_block_forward_nhwc(x, params, stride)
    return jnp.transpose(out, (0, 3, 1, 2))


# ----------------------------------------------------------------------------
# Pure-JAX f32 reference (correctness check)
# ----------------------------------------------------------------------------
def reference_forward(x_nchw, params, stride):
    def conv(x, w, strd, pad):
        return jax.lax.conv_general_dilated(
            x, w, window_strides=(strd, strd), padding=[(pad, pad), (pad, pad)],
            dimension_numbers=("NCHW", "OIHW", "NCHW"))

    def bn(x, g, b, m, v, eps=1e-5):
        g, b, m, v = (a.reshape(1, -1, 1, 1) for a in (g, b, m, v))
        return (x - m) / jnp.sqrt(v + eps) * g + b

    out = jax.nn.relu(bn(conv(x_nchw, params["conv1_w"], stride, 1),
                         params["bn1_gamma"], params["bn1_beta"],
                         params["bn1_mean"], params["bn1_var"]))
    out = bn(conv(out, params["conv2_w"], 1, 1),
             params["bn2_gamma"], params["bn2_beta"],
             params["bn2_mean"], params["bn2_var"])
    if stride != 1 or params["conv1_w"].shape[1] != params["conv1_w"].shape[0]:
        sc = bn(conv(x_nchw, params["sc_conv_w"], stride, 0),
                params["sc_bn_gamma"], params["sc_bn_beta"],
                params["sc_bn_mean"], params["sc_bn_var"])
    else:
        sc = x_nchw
    return jax.nn.relu(out + sc)


# ----------------------------------------------------------------------------
# Deterministic parameter init + example run
# ----------------------------------------------------------------------------
def make_params(key, in_ch, out_ch, stride):
    ks = jax.random.split(key, 12)
    p = {
        "conv1_w": 0.1 * jax.random.normal(ks[0], (out_ch, in_ch, 3, 3), jnp.float32),
        "bn1_gamma": 1.0 + 0.1 * jax.random.normal(ks[1], (out_ch,), jnp.float32),
        "bn1_beta": 0.1 * jax.random.normal(ks[2], (out_ch,), jnp.float32),
        "bn1_mean": 0.05 * jax.random.normal(ks[3], (out_ch,), jnp.float32),
        "bn1_var": 1.0 + 0.1 * jax.random.uniform(ks[4], (out_ch,), jnp.float32),
        "conv2_w": 0.1 * jax.random.normal(ks[5], (out_ch, out_ch, 3, 3), jnp.float32),
        "bn2_gamma": 1.0 + 0.1 * jax.random.normal(ks[6], (out_ch,), jnp.float32),
        "bn2_beta": 0.1 * jax.random.normal(ks[7], (out_ch,), jnp.float32),
        "bn2_mean": 0.05 * jax.random.normal(ks[8], (out_ch,), jnp.float32),
        "bn2_var": 1.0 + 0.1 * jax.random.uniform(ks[9], (out_ch,), jnp.float32),
    }
    if stride != 1 or in_ch != out_ch:
        ks2 = jax.random.split(ks[10], 6)
        p.update({
            "sc_conv_w": 0.1 * jax.random.normal(ks2[0], (out_ch, in_ch, 1, 1), jnp.float32),
            "sc_bn_gamma": 1.0 + 0.1 * jax.random.normal(ks2[1], (out_ch,), jnp.float32),
            "sc_bn_beta": 0.1 * jax.random.normal(ks2[2], (out_ch,), jnp.float32),
            "sc_bn_mean": 0.05 * jax.random.normal(ks2[3], (out_ch,), jnp.float32),
            "sc_bn_var": 1.0 + 0.1 * jax.random.uniform(ks2[4], (out_ch,), jnp.float32),
        })
    return p


if __name__ == "__main__":
    key = jax.random.PRNGKey(0)
    k_x1, k_p1, k_x2, k_p2 = jax.random.split(key, 4)

    # bf16 matmul operands vs f32 reference -> relaxed tolerance.
    ATOL = RTOL = 7e-2

    # Case 1: projection shortcut (stride 2, channels 4 -> 8, spatial 16).
    N, Cin, H, W = 2, 4, 16, 16
    Cout, stride = 8, 2
    x = jax.random.normal(k_x1, (N, Cin, H, W), jnp.float32)
    params = make_params(k_p1, Cin, Cout, stride)
    out = jax.block_until_ready(basic_block_forward(x, params, stride))
    ref = reference_forward(x, params, stride)
    assert out.shape == ref.shape == (N, Cout, H // stride, W // stride)
    assert jnp.allclose(out, ref, atol=ATOL, rtol=RTOL), (
        f"projection-path mismatch, max abs err = {float(jnp.max(jnp.abs(out - ref)))}")

    # Case 2: identity shortcut (stride 1, same channels).
    x2 = jax.random.normal(k_x2, (N, Cout, H, W), jnp.float32)
    params2 = make_params(k_p2, Cout, Cout, 1)
    out2 = jax.block_until_ready(basic_block_forward(x2, params2, 1))
    ref2 = reference_forward(x2, params2, 1)
    assert out2.shape == ref2.shape == (N, Cout, H, W)
    assert jnp.allclose(out2, ref2, atol=ATOL, rtol=RTOL), (
        f"identity-path mismatch, max abs err = {float(jnp.max(jnp.abs(out2 - ref2)))}")

    print("KERNEL_OK")
</pallas_src>

<mosaic_0001>
module attributes {stable_mosaic.version = 11 : i64} {
  func.func @_conv_bn_act_kernel(%arg0: i32, %arg1: i32, %arg2: memref<1x9x9x4xbf16, #tpu.memory_space<vmem>>, %arg3: memref<1x9x9x4xbf16, #tpu.memory_space<vmem>>, %arg4: memref<1x9x9x4xbf16, #tpu.memory_space<vmem>>, %arg5: memref<1x9x9x4xbf16, #tpu.memory_space<vmem>>, %arg6: memref<36x8xbf16, #tpu.memory_space<vmem>>, %arg7: memref<1x8xf32, #tpu.memory_space<vmem>>, %arg8: memref<1x64x8xbf16, #tpu.memory_space<vmem>>) attributes {dimension_semantics = [#tpu.dimension_semantics<parallel>, #tpu.dimension_semantics<parallel>], iteration_bounds = array<i64: 2, 1>, scalar_prefetch = 0 : i64, scratch_operands = 0 : i64, tpu.core_type = #tpu.core_type<tc>, window_params = [{transform_indices = @transform_0, window_bounds = array<i64: 1, 9, 9, 4>}, {transform_indices = @transform_1, window_bounds = array<i64: 1, 9, 9, 4>}, {transform_indices = @transform_2, window_bounds = array<i64: 1, 9, 9, 4>}, {transform_indices = @transform_3, window_bounds = array<i64: 1, 9, 9, 4>}, {pipeline_mode = #tpu.pipeline_mode<synchronous>, transform_indices = @transform_4, window_bounds = array<i64: 36, 8>}, {pipeline_mode = #tpu.pipeline_mode<synchronous>, transform_indices = @transform_5, window_bounds = array<i64: 1, 8>}, {transform_indices = @transform_6, window_bounds = array<i64: 1, 64, 8>}]} {
    %c8_i32 = arith.constant 8 : i32
    %0 = arith.muli %arg1, %c8_i32 : i32
    %1 = tpu.assume_multiple %0, 8 : i32
    %c0_i32 = arith.constant 0 : i32
    %2 = arith.addi %1, %c0_i32 : i32
    %c0 = arith.constant 0 : index
    %3 = arith.index_cast %2 : i32 to index
    %c0_0 = arith.constant 0 : index
    %c0_1 = arith.constant 0 : index
    %4 = vector.load %arg2[%c0, %3, %c0_0, %c0_1] : memref<1x9x9x4xbf16, #tpu.memory_space<vmem>>, vector<1x8x8x4xbf16>
    %5 = vector.shape_cast %4 : vector<1x8x8x4xbf16> to vector<8x8x4xbf16>
    %6 = vector.shape_cast %5 : vector<8x8x4xbf16> to vector<64x4xbf16>
    %7 = arith.extf %6 : vector<64x4xbf16> to vector<64x4xf32>
    %c0_i32_2 = arith.constant 0 : i32
    %8 = arith.addi %1, %c0_i32_2 : i32
    %c0_3 = arith.constant 0 : index
    %9 = arith.index_cast %8 : i32 to index
    %c0_4 = arith.constant 0 : index
    %c0_5 = arith.constant 0 : index
    %10 = vector.load %arg3[%c0_3, %9, %c0_4, %c0_5] : memref<1x9x9x4xbf16, #tpu.memory_space<vmem>>, vector<1x8x8x4xbf16>
    %11 = vector.shape_cast %10 : vector<1x8x8x4xbf16> to vector<8x8x4xbf16>
    %12 = vector.shape_cast %11 : vector<8x8x4xbf16> to vector<64x4xbf16>
    %13 = arith.extf %12 : vector<64x4xbf16> to vector<64x4xf32>
    %c0_i32_6 = arith.constant 0 : i32
    %14 = arith.addi %1, %c0_i32_6 : i32
    %c0_7 = arith.constant 0 : index
    %15 = arith.index_cast %14 : i32 to index
    %c1 = arith.constant 1 : index
    %c0_8 = arith.constant 0 : index
    %16 = vector.load %arg2[%c0_7, %15, %c1, %c0_8] : memref<1x9x9x4xbf16, #tpu.memory_space<vmem>>, vector<1x8x8x4xbf16>
    %17 = vector.shape_cast %16 : vector<1x8x8x4xbf16> to vector<8x8x4xbf16>
    %18 = vector.shape_cast %17 : vector<8x8x4xbf16> to vector<64x4xbf16>
    %19 = arith.extf %18 : vector<64x4xbf16> to vector<64x4xf32>
    %c0_i32_9 = arith.constant 0 : i32
    %20 = arith.addi %1, %c0_i32_9 : i32
    %c0_10 = arith.constant 0 : index
    %21 = arith.index_cast %20 : i32 to index
    %c0_11 = arith.constant 0 : index
    %c0_12 = arith.constant 0 : index
    %22 = vector.load %arg4[%c0_10, %21, %c0_11, %c0_12] : memref<1x9x9x4xbf16, #tpu.memory_space<vmem>>, vector<1x8x8x4xbf16>
    %23 = vector.shape_cast %22 : vector<1x8x8x4xbf16> to vector<8x8x4xbf16>
    %24 = vector.shape_cast %23 : vector<8x8x4xbf16> to vector<64x4xbf16>
    %25 = arith.extf %24 : vector<64x4xbf16> to vector<64x4xf32>
    %c0_i32_13 = arith.constant 0 : i32
    %26 = arith.addi %1, %c0_i32_13 : i32
    %c0_14 = arith.constant 0 : index
    %27 = arith.index_cast %26 : i32 to index
    %c0_15 = arith.constant 0 : index
    %c0_16 = arith.constant 0 : index
    %28 = vector.load %arg5[%c0_14, %27, %c0_15, %c0_16] : memref<1x9x9x4xbf16, #tpu.memory_space<vmem>>, vector<1x8x8x4xbf16>
    %29 = vector.shape_cast %28 : vector<1x8x8x4xbf16> to vector<8x8x4xbf16>
    %30 = vector.shape_cast %29 : vector<8x8x4xbf16> to vector<64x4xbf16>
    %31 = arith.extf %30 : vector<64x4xbf16> to vector<64x4xf32>
    %c0_i32_17 = arith.constant 0 : i32
    %32 = arith.addi %1, %c0_i32_17 : i32
    %c0_18 = arith.constant 0 : index
    %33 = arith.index_cast %32 : i32 to index
    %c1_19 = arith.constant 1 : index
    %c0_20 = arith.constant 0 : index
    %34 = vector.load %arg4[%c0_18, %33, %c1_19, %c0_20] : memref<1x9x9x4xbf16, #tpu.memory_space<vmem>>, vector<1x8x8x4xbf16>
    %35 = vector.shape_cast %34 : vector<1x8x8x4xbf16> to vector<8x8x4xbf16>
    %36 = vector.shape_cast %35 : vector<8x8x4xbf16> to vector<64x4xbf16>
    %37 = arith.extf %36 : vector<64x4xbf16> to vector<64x4xf32>
    %c1_i32 = arith.constant 1 : i32
    %38 = arith.addi %1, %c1_i32 : i32
    %c0_21 = arith.constant 0 : index
    %39 = arith.index_cast %38 : i32 to index
    %c0_22 = arith.constant 0 : index
    %c0_23 = arith.constant 0 : index
    %40 = vector.load %arg2[%c0_21, %39, %c0_22, %c0_23] : memref<1x9x9x4xbf16, #tpu.memory_space<vmem>>, vector<1x8x8x4xbf16>
    %41 = vector.shape_cast %40 : vector<1x8x8x4xbf16> to vector<8x8x4xbf16>
    %42 = vector.shape_cast %41 : vector<8x8x4xbf16> to vector<64x4xbf16>
    %43 = arith.extf %42 : vector<64x4xbf16> to vector<64x4xf32>
    %c1_i32_24 = arith.constant 1 : i32
    %44 = arith.addi %1, %c1_i32_24 : i32
    %c0_25 = arith.constant 0 : index
    %45 = arith.index_cast %44 : i32 to index
    %c0_26 = arith.constant 0 : index
    %c0_27 = arith.constant 0 : index
    %46 = vector.load %arg3[%c0_25, %45, %c0_26, %c0_27] : memref<1x9x9x4xbf16, #tpu.memory_space<vmem>>, vector<1x8x8x4xbf16>
    %47 = vector.shape_cast %46 : vector<1x8x8x4xbf16> to vector<8x8x4xbf16>
    %48 = vector.shape_cast %47 : vector<8x8x4xbf16> to vector<64x4xbf16>
    %49 = arith.extf %48 : vector<64x4xbf16> to vector<64x4xf32>
    %c1_i32_28 = arith.constant 1 : i32
    %50 = arith.addi %1, %c1_i32_28 : i32
    %c0_29 = arith.constant 0 : index
    %51 = arith.index_cast %50 : i32 to index
    %c1_30 = arith.constant 1 : index
    %c0_31 = arith.constant 0 : index
    %52 = vector.load %arg2[%c0_29, %51, %c1_30, %c0_31] : memref<1x9x9x4xbf16, #tpu.memory_space<vmem>>, vector<1x8x8x4xbf16>
    %53 = vector.shape_cast %52 : vector<1x8x8x4xbf16> to vector<8x8x4xbf16>
    %54 = vector.shape_cast %53 : vector<8x8x4xbf16> to vector<64x4xbf16>
    %55 = arith.extf %54 : vector<64x4xbf16> to vector<64x4xf32>
    %56 = tpu.concatenate %7, %13, %19, %25, %31, %37, %43, %49, %55 in 1 : vector<64x4xf32>, vector<64x4xf32>, vector<64x4xf32>, vector<64x4xf32>, vector<64x4xf32>, vector<64x4xf32>, vector<64x4xf32>, vector<64x4xf32>, vector<64x4xf32> -> vector<64x36xf32>
    %57 = arith.truncf %56 : vector<64x36xf32> to vector<64x36xbf16>
    %c0_32 = arith.constant 0 : index
    %c0_33 = arith.constant 0 : index
    %58 = vector.load %arg6[%c0_32, %c0_33] : memref<36x8xbf16, #tpu.memory_space<vmem>>, vector<36x8xbf16>
    %cst = arith.constant dense<0.000000e+00> : vector<64x8xf32>
    %59 = tpu.matmul %57, %58, %cst {dimension_numbers = #tpu.dot_dimension_numbers<[1], [0], [0], [1], [0, 0, 1, 1], [], []>} : vector<64x36xbf16>, vector<36x8xbf16>, vector<64x8xf32> -> vector<64x8xf32>
    %c0_34 = arith.constant 0 : index
    %c0_35 = arith.constant 0 : index
    %60 = vector.load %arg7[%c0_34, %c0_35] : memref<1x8xf32, #tpu.memory_space<vmem>>, vector<1x8xf32>
    %61 = vector.broadcast %60 : vector<1x8xf32> to vector<64x8xf32>
    %62 = arith.addf %59, %61 : vector<64x8xf32>
    %cst_36 = arith.constant 0.000000e+00 : f32
    %63 = vector.broadcast %cst_36 : f32 to vector<64x8xf32>
    %64 = arith.maximumf %62, %63 : vector<64x8xf32>
    %65 = arith.truncf %64 : vector<64x8xf32> to vector<64x8xbf16>
    %c0_37 = arith.constant 0 : index
    %c0_38 = arith.constant 0 : index
    %c0_39 = arith.constant 0 : index
    %66 = vector.load %arg8[%c0_37, %c0_38, %c0_39] : memref<1x64x8xbf16, #tpu.memory_space<vmem>>, vector<1x64x8xbf16>
    %67 = vector.shape_cast %66 : vector<1x64x8xbf16> to vector<64x8xbf16>
    %68 = vector.shape_cast %65 : vector<64x8xbf16> to vector<1x64x8xbf16>
    tpu.vector_store %arg8[%c0_37, %c0_38, %c0_39], %68 {strides = array<i32>} : memref<1x64x8xbf16, #tpu.memory_space<vmem>>, vector<1x64x8xbf16>,
    return
  }
  func.func @transform_0(%arg0: i32, %arg1: i32) -> (i32, i32, i32, i32) {
    %c0_i32 = arith.constant 0 : i32
    %c0_i32_0 = arith.constant 0 : i32
    %c0_i32_1 = arith.constant 0 : i32
    %c0_i32_2 = arith.constant 0 : i32
    return %arg0, %c0_i32, %c0_i32_0, %c0_i32_1 : i32, i32, i32, i32
  }
  func.func @transform_1(%arg0: i32, %arg1: i32) -> (i32, i32, i32, i32) {
    %c0_i32 = arith.constant 0 : i32
    %c0_i32_0 = arith.constant 0 : i32
    %c0_i32_1 = arith.constant 0 : i32
    %c0_i32_2 = arith.constant 0 : i32
    return %arg0, %c0_i32, %c0_i32_0, %c0_i32_1 : i32, i32, i32, i32
  }
  func.func @transform_2(%arg0: i32, %arg1: i32) -> (i32, i32, i32, i32) {
    %c0_i32 = arith.constant 0 : i32
    %c0_i32_0 = arith.constant 0 : i32
    %c0_i32_1 = arith.constant 0 : i32
    %c0_i32_2 = arith.constant 0 : i32
    return %arg0, %c0_i32, %c0_i32_0, %c0_i32_1 : i32, i32, i32, i32
  }
  func.func @transform_3(%arg0: i32, %arg1: i32) -> (i32, i32, i32, i32) {
    %c0_i32 = arith.constant 0 : i32
    %c0_i32_0 = arith.constant 0 : i32
    %c0_i32_1 = arith.constant 0 : i32
    %c0_i32_2 = arith.constant 0 : i32
    return %arg0, %c0_i32, %c0_i32_0, %c0_i32_1 : i32, i32, i32, i32
  }
  func.func @transform_4(%arg0: i32, %arg1: i32) -> (i32, i32) {
    %c0_i32 = arith.constant 0 : i32
    %c0_i32_0 = arith.constant 0 : i32
    %c0_i32_1 = arith.constant 0 : i32
    return %c0_i32, %c0_i32_0 : i32, i32
  }
  func.func @transform_5(%arg0: i32, %arg1: i32) -> (i32, i32) {
    %c0_i32 = arith.constant 0 : i32
    %c0_i32_0 = arith.constant 0 : i32
    %c0_i32_1 = arith.constant 0 : i32
    return %c0_i32, %c0_i32_0 : i32, i32
  }
  func.func @transform_6(%arg0: i32, %arg1: i32) -> (i32, i32, i32) {
    %c0_i32 = arith.constant 0 : i32
    %c0_i32_0 = arith.constant 0 : i32
    return %arg0, %arg1, %c0_i32 : i32, i32, i32
  }
}

module attributes {stable_mosaic.version = 11 : i64} {
  func.func @_conv_bn_act_kernel(%arg0: i32, %arg1: i32, %arg2: memref<1x8x8x8xbf16, #tpu.memory_space<vmem>>, %arg3: memref<72x8xbf16, #tpu.memory_space<vmem>>, %arg4: memref<1x8xf32, #tpu.memory_space<vmem>>, %arg5: memref<1x8x9x4xbf16, #tpu.memory_space<vmem>>, %arg6: memref<4x8xbf16, #tpu.memory_space<vmem>>, %arg7: memref<1x64x8xf32, #tpu.memory_space<vmem>>, %arg8: memref<10x10x8xf32, #tpu.memory_space<vmem>>) attributes {dimension_semantics = [#tpu.dimension_semantics<parallel>, #tpu.dimension_semantics<arbitrary>], iteration_bounds = array<i64: 2, 1>, scalar_prefetch = 0 : i64, scratch_operands = 1 : i64, tpu.core_type = #tpu.core_type<tc>, window_params = [{transform_indices = @transform_0, window_bounds = array<i64: 1, 8, 8, 8>}, {pipeline_mode = #tpu.pipeline_mode<synchronous>, transform_indices = @transform_1, window_bounds = array<i64: 72, 8>}, {pipeline_mode = #tpu.pipeline_mode<synchronous>, transform_indices = @transform_2, window_bounds = array<i64: 1, 8>}, {transform_indices = @transform_3, window_bounds = array<i64: 1, 8, 9, 4>}, {pipeline_mode = #tpu.pipeline_mode<synchronous>, transform_indices = @transform_4, window_bounds = array<i64: 4, 8>}, {transform_indices = @transform_5, window_bounds = array<i64: 1, 64, 8>}]} {
    %c0_i32 = arith.constant 0 : i32
    %0 = arith.cmpi eq, %arg1, %c0_i32 : i32
    %1 = arith.extui %0 : i1 to i32
    %c0_i32_0 = arith.constant 0 : i32
    %2 = arith.cmpi ne, %1, %c0_i32_0 : i32
    scf.if %2 {
      %c0_38 = arith.constant 0 : index
      %c0_39 = arith.constant 0 : index
      %c0_40 = arith.constant 0 : index
      %c0_41 = arith.constant 0 : index
      %59 = vector.load %arg2[%c0_38, %c0_39, %c0_40, %c0_41] : memref<1x8x8x8xbf16, #tpu.memory_space<vmem>>, vector<1x8x8x8xbf16>
      %60 = vector.shape_cast %59 : vector<1x8x8x8xbf16> to vector<8x8x8xbf16>
      %cst_42 = arith.constant 0.000000e+00 : f32
      %61 = vector.broadcast %cst_42 : f32 to vector<10x10x8xf32>
      %c0_43 = arith.constant 0 : index
      %c0_44 = arith.constant 0 : index
      %c0_45 = arith.constant 0 : index
      %62 = vector.load %arg8[%c0_43, %c0_44, %c0_45] : memref<10x10x8xf32, #tpu.memory_space<vmem>>, vector<10x10x8xf32>
      tpu.vector_store %arg8[%c0_43, %c0_44, %c0_45], %61 {strides = array<i32>} : memref<10x10x8xf32, #tpu.memory_space<vmem>>, vector<10x10x8xf32>,
      %63 = arith.extf %60 : vector<8x8x8xbf16> to vector<8x8x8xf32>
      %c1_46 = arith.constant 1 : index
      %c1_47 = arith.constant 1 : index
      %c0_48 = arith.constant 0 : index
      %64 = vector.load %arg8[%c1_46, %c1_47, %c0_48] : memref<10x10x8xf32, #tpu.memory_space<vmem>>, vector<8x8x8xf32>
      tpu.vector_store %arg8[%c1_46, %c1_47, %c0_48], %63 {strides = array<i32>} : memref<10x10x8xf32, #tpu.memory_space<vmem>>, vector<8x8x8xf32>,
    } else {
    }
    %c8_i32 = arith.constant 8 : i32
    %3 = arith.muli %arg1, %c8_i32 : i32
    %4 = tpu.assume_multiple %3, 8 : i32
    %c0_i32_1 = arith.constant 0 : i32
    %5 = arith.addi %4, %c0_i32_1 : i32
    %6 = arith.index_cast %5 : i32 to index
    %c0 = arith.constant 0 : index
    %c0_2 = arith.constant 0 : index
    %7 = vector.load %arg8[%6, %c0, %c0_2] : memref<10x10x8xf32, #tpu.memory_space<vmem>>, vector<8x8x8xf32>
    %8 = vector.shape_cast %7 : vector<8x8x8xf32> to vector<64x8xf32>
    %c0_i32_3 = arith.constant 0 : i32
    %9 = arith.addi %4, %c0_i32_3 : i32
    %10 = arith.index_cast %9 : i32 to index
    %c1 = arith.constant 1 : index
    %c0_4 = arith.constant 0 : index
    %11 = vector.load %arg8[%10, %c1, %c0_4] : memref<10x10x8xf32, #tpu.memory_space<vmem>>, vector<8x8x8xf32>
    %12 = vector.shape_cast %11 : vector<8x8x8xf32> to vector<64x8xf32>
    %c0_i32_5 = arith.constant 0 : i32
    %13 = arith.addi %4, %c0_i32_5 : i32
    %14 = arith.index_cast %13 : i32 to index
    %c2 = arith.constant 2 : index
    %c0_6 = arith.constant 0 : index
    %15 = vector.load %arg8[%14, %c2, %c0_6] : memref<10x10x8xf32, #tpu.memory_space<vmem>>, vector<8x8x8xf32>
    %16 = vector.shape_cast %15 : vector<8x8x8xf32> to vector<64x8xf32>
    %c1_i32 = arith.constant 1 : i32
    %17 = arith.addi %4, %c1_i32 : i32
    %18 = arith.index_cast %17 : i32 to index
    %c0_7 = arith.constant 0 : index
    %c0_8 = arith.constant 0 : index
    %19 = vector.load %arg8[%18, %c0_7, %c0_8] : memref<10x10x8xf32, #tpu.memory_space<vmem>>, vector<8x8x8xf32>
    %20 = vector.shape_cast %19 : vector<8x8x8xf32> to vector<64x8xf32>
    %c1_i32_9 = arith.constant 1 : i32
    %21 = arith.addi %4, %c1_i32_9 : i32
    %22 = arith.index_cast %21 : i32 to index
    %c1_10 = arith.constant 1 : index
    %c0_11 = arith.constant 0 : index
    %23 = vector.load %arg8[%22, %c1_10, %c0_11] : memref<10x10x8xf32, #tpu.memory_space<vmem>>, vector<8x8x8xf32>
    %24 = vector.shape_cast %23 : vector<8x8x8xf32> to vector<64x8xf32>
    %c1_i32_12 = arith.constant 1 : i32
    %25 = arith.addi %4, %c1_i32_12 : i32
    %26 = arith.index_cast %25 : i32 to index
    %c2_13 = arith.constant 2 : index
    %c0_14 = arith.constant 0 : index
    %27 = vector.load %arg8[%26, %c2_13, %c0_14] : memref<10x10x8xf32, #tpu.memory_space<vmem>>, vector<8x8x8xf32>
    %28 = vector.shape_cast %27 : vector<8x8x8xf32> to vector<64x8xf32>
    %c2_i32 = arith.constant 2 : i32
    %29 = arith.addi %4, %c2_i32 : i32
    %30 = arith.index_cast %29 : i32 to index
    %c0_15 = arith.constant 0 : index
    %c0_16 = arith.constant 0 : index
    %31 = vector.load %arg8[%30, %c0_15, %c0_16] : memref<10x10x8xf32, #tpu.memory_space<vmem>>, vector<8x8x8xf32>
    %32 = vector.shape_cast %31 : vector<8x8x8xf32> to vector<64x8xf32>
    %c2_i32_17 = arith.constant 2 : i32
    %33 = arith.addi %4, %c2_i32_17 : i32
    %34 = arith.index_cast %33 : i32 to index
    %c1_18 = arith.constant 1 : index
    %c0_19 = arith.constant 0 : index
    %35 = vector.load %arg8[%34, %c1_18, %c0_19] : memref<10x10x8xf32, #tpu.memory_space<vmem>>, vector<8x8x8xf32>
    %36 = vector.shape_cast %35 : vector<8x8x8xf32> to vector<64x8xf32>
    %c2_i32_20 = arith.constant 2 : i32
    %37 = arith.addi %4, %c2_i32_20 : i32
    %38 = arith.index_cast %37 : i32 to index
    %c2_21 = arith.constant 2 : index
    %c0_22 = arith.constant 0 : index
    %39 = vector.load %arg8[%38, %c2_21, %c0_22] : memref<10x10x8xf32, #tpu.memory_space<vmem>>, vector<8x8x8xf32>
    %40 = vector.shape_cast %39 : vector<8x8x8xf32> to vector<64x8xf32>
    %41 = tpu.concatenate %8, %12, %16, %20, %24, %28, %32, %36, %40 in 1 : vector<64x8xf32>, vector<64x8xf32>, vector<64x8xf32>, vector<64x8xf32>, vector<64x8xf32>, vector<64x8xf32>, vector<64x8xf32>, vector<64x8xf32>, vector<64x8xf32> -> vector<64x72xf32>
    %42 = arith.truncf %41 : vector<64x72xf32> to vector<64x72xbf16>
    %c0_23 = arith.constant 0 : index
    %c0_24 = arith.constant 0 : index
    %43 = vector.load %arg3[%c0_23, %c0_24] : memref<72x8xbf16, #tpu.memory_space<vmem>>, vector<72x8xbf16>
    %cst = arith.constant dense<0.000000e+00> : vector<64x8xf32>
    %44 = tpu.matmul %42, %43, %cst {dimension_numbers = #tpu.dot_dimension_numbers<[1], [0], [0], [1], [0, 0, 1, 1], [], []>} : vector<64x72xbf16>, vector<72x8xbf16>, vector<64x8xf32> -> vector<64x8xf32>
    %c0_25 = arith.constant 0 : index
    %c0_26 = arith.constant 0 : index
    %45 = vector.load %arg4[%c0_25, %c0_26] : memref<1x8xf32, #tpu.memory_space<vmem>>, vector<1x8xf32>
    %46 = vector.broadcast %45 : vector<1x8xf32> to vector<64x8xf32>
    %47 = arith.addf %44, %46 : vector<64x8xf32>
    %c0_27 = arith.constant 0 : index
    %c0_28 = arith.constant 0 : index
    %c0_29 = arith.constant 0 : index
    %c0_30 = arith.constant 0 : index
    %48 = vector.load %arg5[%c0_27, %c0_28, %c0_29, %c0_30] : memref<1x8x9x4xbf16, #tpu.memory_space<vmem>>, vector<1x8x8x4xbf16>
    %49 = vector.shape_cast %48 : vector<1x8x8x4xbf16> to vector<8x8x4xbf16>
    %50 = vector.shape_cast %49 : vector<8x8x4xbf16> to vector<64x4xbf16>
    %c0_31 = arith.constant 0 : index
    %c0_32 = arith.constant 0 : index
    %51 = vector.load %arg6[%c0_31, %c0_32] : memref<4x8xbf16, #tpu.memory_space<vmem>>, vector<4x8xbf16>
    %cst_33 = arith.constant dense<0.000000e+00> : vector<64x8xf32>
    %52 = tpu.matmul %50, %51, %cst_33 {dimension_numbers = #tpu.dot_dimension_numbers<[1], [0], [0], [1], [0, 0, 1, 1], [], []>} : vector<64x4xbf16>, vector<4x8xbf16>, vector<64x8xf32> -> vector<64x8xf32>
    %53 = arith.addf %47, %52 : vector<64x8xf32>
    %cst_34 = arith.constant 0.000000e+00 : f32
    %54 = vector.broadcast %cst_34 : f32 to vector<64x8xf32>
    %55 = arith.maximumf %53, %54 : vector<64x8xf32>
    %c0_35 = arith.constant 0 : index
    %c0_36 = arith.constant 0 : index
    %c0_37 = arith.constant 0 : index
    %56 = vector.load %arg7[%c0_35, %c0_36, %c0_37] : memref<1x64x8xf32, #tpu.memory_space<vmem>>, vector<1x64x8xf32>
    %57 = vector.shape_cast %56 : vector<1x64x8xf32> to vector<64x8xf32>
    %58 = vector.shape_cast %55 : vector<64x8xf32> to vector<1x64x8xf32>
    tpu.vector_store %arg7[%c0_35, %c0_36, %c0_37], %58 {strides = array<i32>} : memref<1x64x8xf32, #tpu.memory_space<vmem>>, vector<1x64x8xf32>,
    return
  }
  func.func @transform_0(%arg0: i32, %arg1: i32) -> (i32, i32, i32, i32) {
    %c0_i32 = arith.constant 0 : i32
    %c0_i32_0 = arith.constant 0 : i32
    %c0_i32_1 = arith.constant 0 : i32
    %c0_i32_2 = arith.constant 0 : i32
    return %arg0, %c0_i32, %c0_i32_0, %c0_i32_1 : i32, i32, i32, i32
  }
  func.func @transform_1(%arg0: i32, %arg1: i32) -> (i32, i32) {
    %c0_i32 = arith.constant 0 : i32
    %c0_i32_0 = arith.constant 0 : i32
    %c0_i32_1 = arith.constant 0 : i32
    return %c0_i32, %c0_i32_0 : i32, i32
  }
  func.func @transform_2(%arg0: i32, %arg1: i32) -> (i32, i32) {
    %c0_i32 = arith.constant 0 : i32
    %c0_i32_0 = arith.constant 0 : i32
    %c0_i32_1 = arith.constant 0 : i32
    return %c0_i32, %c0_i32_0 : i32, i32
  }
  func.func @transform_3(%arg0: i32, %arg1: i32) -> (i32, i32, i32, i32) {
    %c0_i32 = arith.constant 0 : i32
    %c0_i32_0 = arith.constant 0 : i32
    %c0_i32_1 = arith.constant 0 : i32
    return %arg0, %arg1, %c0_i32, %c0_i32_0 : i32, i32, i32, i32
  }
  func.func @transform_4(%arg0: i32, %arg1: i32) -> (i32, i32) {
    %c0_i32 = arith.constant 0 : i32
    %c0_i32_0 = arith.constant 0 : i32
    %c0_i32_1 = arith.constant 0 : i32
    return %c0_i32, %c0_i32_0 : i32, i32
  }
  func.func @transform_5(%arg0: i32, %arg1: i32) -> (i32, i32, i32) {
    %c0_i32 = arith.constant 0 : i32
    %c0_i32_0 = arith.constant 0 : i32
    return %arg0, %arg1, %c0_i32 : i32, i32, i32
  }
}

</mosaic_0001>

<llo_original>
// kernel: basic_block_forward.3
$region0: #{basic_block_forward.3}
  #allocation0 [shape = 'u32[]', space=smem, size = 0x4, offset = 0x4, fixed_abs, tag = 'smem constant byte address 0x4 - core index']
  #allocation1 [shape = 'u32[72,128]{1,0:T(1,128)}', space=vmem, size = 0x9000, scoped, tag = 'internal scratch']
  #allocation2 [shape = 'f32[10,10,8]{2,1,0:T(8,128)}', space=vmem, size = 0x14000, scoped, tag = 'scratch operand']
  %s0 = inlined_call_operand.vmem [shape: bf16[2,8,8,8], index: 0, kind: input, shape index: {}]
  %s1 = inlined_call_operand.vmem [shape: bf16[72,8], index: 1, kind: input, shape index: {}]
  %s2 = inlined_call_operand.vmem [shape: f32[1,8], index: 2, kind: input, shape index: {}]
  %s3 = inlined_call_operand.vmem [shape: bf16[2,9,9,4], index: 3, kind: input, shape index: {}]
  %s4 = inlined_call_operand.vmem [shape: bf16[4,8], index: 4, kind: input, shape index: {}]
  %s5 = inlined_call_operand.vmem [shape: f32[2,64,8], index: 5, kind: output, shape index: {}]
  %s6 = sld [smem:[#allocation0]]
  $region57: #{basic_block_forward.3} parent=0
    _
  %s8 = ssub.s32 1, %s6
  %s9 = scalar_select 0, %s8, %s6
  loop: start=0, step=1, limit=4
  $region2: #{basic_block_forward.3} parent=0 // loop_pre_header
    _
  $region3: #{basic_block_forward.3} parent=0 // loop_header
    %s11 = sphi 0, %s15
    %p12 = scmp.ge.s32.totalorder %s11, 4
    %s18 = sphi 0, %s30
    %s19 = sphi 0, %s26
    %s20 = sphi 0, %s18
    %s21 = sphi 0, %s19
    %s22 = sphi 0, %s20
    %s23 = sphi 0, %s21
    %s33 = sphi 0, %s35
    %s36 = sphi 0, %s33
    %s37 = sphi 0, %s36
    %s53 = sphi 0, %s37
    %s57 = sphi 0, %s57
    %s59 = sphi 0, %s57
    %s60 = sphi 0, %s59
    %s74 = sphi 0, %s60
    %s78 = sphi 0, %s78
    %s80 = sphi 0, %s78
    %s81 = sphi 0, %s80
    %s95 = sphi 0, %s81
    %s103 = sphi 0, %s105
    %s106 = sphi 0, %s103
    %s107 = sphi 0, %s106
    %s123 = sphi 0, %s107
    %s127 = sphi 0, %s127
    %s129 = sphi 0, %s127
    %s130 = sphi 0, %s129
    %s144 = sphi 0, %s130
    %s152 = sphi 0, %s154
    %s155 = sphi 0, %s152
    %s156 = sphi 0, %s155
    %s172 = sphi 0, %s156
  $region4: #{basic_block_forward.3} parent=0 // loop_header_branch
    %14 = sbr.rel (%p12) target = $region8
  $region5: #{basic_block_forward.3} parent=0 // loop_body
    %s16 = ssub.s32 %s11, 1
    %s17 = ssub.s32 %s11, 2
    %s24 = sadd.s32 1, %s19
    %p25 = scmp.ge.s32.totalorder %s24, 1
    %s26 = scalar_select %p25, 0, %s24
    %s27 = sadd.s32 1, %s18
    %s28 = scalar_select %p25, %s27, %s18
    %p29 = scmp.ge.s32.totalorder %s28, 2
    %s30 = scalar_select %p29, 0, %s28
    %s31 = ssub.s32 %s18, %s30
    %p32 = scmp.eq.s32.totalorder %s31, 0
    %s34 = sadd.s32 %s33, 1
    %s35 = scalar_select %p32, %s33, %s34
    %p38 = pneg %p32
    %p39 = scmp.eq.s32.totalorder %s11, 1
    %p40 = por %p38, %p39
    %p41 = scmp.ne.s32.totalorder %s33, %s36
    %p42 = scmp.eq.s32.totalorder %s11, 0
    %p43 = por %p41, %p42
    %p44 = scmp.ne.s32.totalorder %s33, %s36
    %p45 = scmp.eq.s32.totalorder %s16, 1
    %p46 = por %p44, %p45
    %p47 = scmp.ne.s32.totalorder %s36, %s37
    %p48 = scmp.eq.s32.totalorder %s16, 0
    %p49 = por %p47, %p48
    %p50 = scmp.ne.s32.totalorder %s36, %s37
    %p51 = scmp.eq.s32.totalorder %s17, 1
    %p52 = por %p50, %p51
    %p54 = scmp.ne.s32.totalorder %s37, %s53
    %p55 = scmp.eq.s32.totalorder %s17, 0
    %p56 = por %p54, %p55
    %s58 = sadd.s32 %s57, 1
    %p61 = scmp.eq.s32.totalorder %s11, 1
    %p62 = scmp.ne.s32.totalorder %s57, %s59
    %p63 = scmp.eq.s32.totalorder %s11, 0
    %p64 = por %p62, %p63
    %p65 = scmp.ne.s32.totalorder %s57, %s59
    %p66 = scmp.eq.s32.totalorder %s16, 1
    %p67 = por %p65, %p66
    %p68 = scmp.ne.s32.totalorder %s59, %s60
    %p69 = scmp.eq.s32.totalorder %s16, 0
    %p70 = por %p68, %p69
    %p71 = scmp.ne.s32.totalorder %s59, %s60
    %p72 = scmp.eq.s32.totalorder %s17, 1
    %p73 = por %p71, %p72
    %p75 = scmp.ne.s32.totalorder %s60, %s74
    %p76 = scmp.eq.s32.totalorder %s17, 0
    %p77 = por %p75, %p76
    %s79 = sadd.s32 %s78, 1
    %p82 = scmp.eq.s32.totalorder %s11, 1
    %p83 = scmp.ne.s32.totalorder %s78, %s80
    %p84 = scmp.eq.s32.totalorder %s11, 0
    %p85 = por %p83, %p84
    %p86 = scmp.ne.s32.totalorder %s78, %s80
    %p87 = scmp.eq.s32.totalorder %s16, 1
    %p88 = por %p86, %p87
    %p89 = scmp.ne.s32.totalorder %s80, %s81
    %p90 = scmp.eq.s32.totalorder %s16, 0
    %p91 = por %p89, %p90
    %p92 = scmp.ne.s32.totalorder %s80, %s81
    %p93 = scmp.eq.s32.totalorder %s17, 1
    %p94 = por %p92, %p93
    %p96 = scmp.ne.s32.totalorder %s81, %s95
    %p97 = scmp.eq.s32.totalorder %s17, 0
    %p98 = por %p96, %p97
    %s99 = ssub.s32 %s18, %s30
    %s100 = ssub.s32 %s19, %s26
    %s101 = sor.u32 %s99, %s100
    %p102 = scmp.eq.s32.totalorder %s101, 0
    %s104 = sadd.s32 %s103, 1
    %s105 = scalar_select %p102, %s103, %s104
    %p108 = pneg %p102
    %p109 = scmp.eq.s32.totalorder %s11, 1
    %p110 = por %p108, %p109
    %p111 = scmp.ne.s32.totalorder %s103, %s106
    %p112 = scmp.eq.s32.totalorder %s11, 0
    %p113 = por %p111, %p112
    %p114 = scmp.ne.s32.totalorder %s103, %s106
    %p115 = scmp.eq.s32.totalorder %s16, 1
    %p116 = por %p114, %p115
    %p117 = scmp.ne.s32.totalorder %s106, %s107
    %p118 = scmp.eq.s32.totalorder %s16, 0
    %p119 = por %p117, %p118
    %p120 = scmp.ne.s32.totalorder %s106, %s107
    %p121 = scmp.eq.s32.totalorder %s17, 1
    %p122 = por %p120, %p121
    %p124 = scmp.ne.s32.totalorder %s107, %s123
    %p125 = scmp.eq.s32.totalorder %s17, 0
    %p126 = por %p124, %p125
    %s128 = sadd.s32 %s127, 1
    %p131 = scmp.eq.s32.totalorder %s11, 1
    %p132 = scmp.ne.s32.totalorder %s127, %s129
    %p133 = scmp.eq.s32.totalorder %s11, 0
    %p134 = por %p132, %p133
    %p135 = scmp.ne.s32.totalorder %s127, %s129
    %p136 = scmp.eq.s32.totalorder %s16, 1
    %p137 = por %p135, %p136
    %p138 = scmp.ne.s32.totalorder %s129, %s130
    %p139 = scmp.eq.s32.totalorder %s16, 0
    %p140 = por %p138, %p139
    %p141 = scmp.ne.s32.totalorder %s129, %s130
    %p142 = scmp.eq.s32.totalorder %s17, 1
    %p143 = por %p141, %p142
    %p145 = scmp.ne.s32.totalorder %s130, %s144
    %p146 = scmp.eq.s32.totalorder %s17, 0
    %p147 = por %p145, %p146
    %s148 = ssub.s32 %s18, %s30
    %s149 = ssub.s32 %s19, %s26
    %s150 = sor.u32 %s148, %s149
    %p151 = scmp.eq.s32.totalorder %s150, 0
    %s153 = sadd.s32 %s152, 1
    %s154 = scalar_select %p151, %s152, %s153
    %p157 = pneg %p151
    %p158 = scmp.eq.s32.totalorder %s11, 1
    %p159 = por %p157, %p158
    %p160 = scmp.ne.s32.totalorder %s152, %s155
    %p161 = scmp.eq.s32.totalorder %s11, 0
    %p162 = por %p160, %p161
    %p163 = scmp.ne.s32.totalorder %s152, %s155
    %p164 = scmp.eq.s32.totalorder %s16, 1
    %p165 = por %p163, %p164
    %p166 = scmp.ne.s32.totalorder %s155, %s156
    %p167 = scmp.eq.s32.totalorder %s16, 0
    %p168 = por %p166, %p167
    %p169 = scmp.ne.s32.totalorder %s155, %s156
    %p170 = scmp.eq.s32.totalorder %s17, 1
    %p171 = por %p169, %p170
    %p173 = scmp.ne.s32.totalorder %s156, %s172
    %p174 = scmp.eq.s32.totalorder %s17, 0
    %p175 = por %p173, %p174
    %p176 = scmp.le.s32.totalorder 1, %s11
    %p177 = scmp.lt.s32.totalorder %s11, 3
    %p178 = pnand %p176, %p177
    %p179 = pneg %p178
    // Predicated region
    $region9: #{basic_block_forward.3} parent=5 // pred_check
      _
    $region10: #{basic_block_forward.3} parent=5 // pred_check_branch
      %181 = sbr.rel (%p178) target = $region12
    $region11: #{basic_block_forward.3} parent=5 // pred_region
      %s182 = ssub.s32 %s11, 1
      // Predicated region
      $region13: #{basic_block_forward.3} parent=11 // pred_check
        %p183 = pneg %p70
      $region14: #{basic_block_forward.3} parent=11 // pred_check_branch
        %185 = sbr.rel (%p183) target = $region16
      $region15: #{basic_block_forward.3} parent=11 // pred_region
        _
      $region16: #{basic_block_forward.3} parent=11 // pred_fallthru
        _
      // Predicated region
      $region17: #{basic_block_forward.3} parent=11 // pred_check
        %p186 = pneg %p91
      $region18: #{basic_block_forward.3} parent=11 // pred_check_branch
        %188 = sbr.rel (%p186) target = $region20
      $region19: #{basic_block_forward.3} parent=11 // pred_region
        _
      $region20: #{basic_block_forward.3} parent=11 // pred_fallthru
        _
      // Predicated region
      $region21: #{basic_block_forward.3} parent=11 // pred_check
        %p189 = pneg %p140
      $region22: #{basic_block_forward.3} parent=11 // pred_check_branch
        %191 = sbr.rel (%p189) target = $region24
      $region23: #{basic_block_forward.3} parent=11 // pred_region
        _
      $region24: #{basic_block_forward.3} parent=11 // pred_fallthru
        _
    $region12: #{basic_block_forward.3} parent=5 // pred_fallthru
      _
    %p192 = scmp.lt.s32.totalorder %s11, 2
    // Predicated region
    $region25: #{basic_block_forward.3} parent=5 // pred_check
      %p193 = pneg %p192
    $region26: #{basic_block_forward.3} parent=5 // pred_check_branch
      %195 = sbr.rel (%p193) target = $region28
    $region27: #{basic_block_forward.3} parent=5 // pred_region
      // Predicated region
      $region29: #{basic_block_forward.3} parent=27 // pred_check
        %p196 = pneg %p43
      $region30: #{basic_block_forward.3} parent=27 // pred_check_branch
        %198 = sbr.rel (%p196) target = $region32
      $region31: #{basic_block_forward.3} parent=27 // pred_region
        %p199 = scmp.lt.s32.totalorder %s18, 1
        %s200 = scalar_select %p199, %s18, 1
        %s201 = smul.addr %s200, 8
        %s202 = smul.addr %s201, 4
        %s203 = scalar_lea.vmem %s0, %s202
      $region32: #{basic_block_forward.3} parent=27 // pred_fallthru
        _
      // Predicated region
      $region33: #{basic_block_forward.3} parent=27 // pred_check
        %p204 = pneg %p113
      $region34: #{basic_block_forward.3} parent=27 // pred_check_branch
        %206 = sbr.rel (%p204) target = $region36
      $region35: #{basic_block_forward.3} parent=27 // pred_region
        %s207 = smul.u32 8, %s19
        %s208 = ssub.s32 9, %s207
        %p209 = scmp.lt.s32.totalorder %s208, 8
        %s210 = scalar_select %p209, %s208, 8
        %s211 = smul.u32 4, %s210
        %s212 = smul.u32 %s211, 2
        %p213 = scmp.lt.s32.totalorder %s18, 1
        %s214 = scalar_select %p213, %s18, 1
        %p215 = scmp.lt.s32.totalorder %s207, 8
        %s216 = scalar_select %p215, %s207, 8
        %s217 = smul.addr %s216, 2
        %s218 = smul.addr %s214, 18
        %s219 = sadd.s32 %s217, %s218
        %s220 = smul.addr %s219, 4
        %s221 = scalar_lea.vmem %s3, %s220
        %s222 = smul.u32 8, %s19
        %s223 = ssub.s32 9, %s222
        %p224 = scmp.lt.s32.totalorder %s223, 8
        %s225 = scalar_select %p224, %s223, 8
        %s226 = smul.u32 4, %s225
        %s227 = smul.u32 %s226, 2
      $region36: #{basic_block_forward.3} parent=27 // pred_fallthru
        _
    $region28: #{basic_block_forward.3} parent=5 // pred_fallthru
      _
    %p228 = scmp.le.s32.totalorder 1, %s11
    %p229 = scmp.lt.s32.totalorder %s11, 3
    %p230 = pnand %p228, %p229
    %p231 = pneg %p230
    // Predicated region
    $region37: #{basic_block_forward.3} parent=5 // pred_check
      _
    $region38: #{basic_block_forward.3} parent=5 // pred_check_branch
      %233 = sbr.rel (%p230) target = $region40
    $region39: #{basic_block_forward.3} parent=5 // pred_region
      %s234 = ssub.s32 %s11, 1
      %p235 = scmp.lt.s32.totalorder %s20, 1
      %s236 = scalar_select %p235, %s20, 1
      %s237 = smul.addr %s236, 8
      %s238 = smul.addr %s237, 4
      %s239 = scalar_lea.vmem %s0, %s238
      %p240 = pneg %p49
      %p241 = pneg %p46
      %p242 = pneg %p70
      %p243 = pneg %p67
      %p244 = pneg %p91
      %p245 = pneg %p88
      %s246 = smul.u32 8, %s21
      %s247 = ssub.s32 9, %s246
      %p248 = scmp.lt.s32.totalorder %s247, 8
      %s249 = scalar_select %p248, %s247, 8
      %s250 = smul.u32 4, %s249
      %s251 = smul.u32 %s250, 2
      %p252 = scmp.lt.s32.totalorder %s20, 1
      %s253 = scalar_select %p252, %s20, 1
      %p254 = scmp.lt.s32.totalorder %s246, 8
      %s255 = scalar_select %p254, %s246, 8
      %s256 = smul.addr %s255, 2
      %s257 = smul.addr %s253, 18
      %s258 = sadd.s32 %s256, %s257
      %s259 = smul.addr %s258, 4
      %s260 = scalar_lea.vmem %s3, %s259
      %p261 = pneg %p119
      %p262 = pneg %p116
      %p263 = pneg %p140
      %p264 = pneg %p137
      %p265 = pneg %p168
      %p266 = pneg %p165
      %s267 = smul.u32 8, %s21
      %p268 = scmp.lt.s32.totalorder %s20, 1
      %s269 = scalar_select %p268, %s20, 1
      %p270 = scmp.lt.s32.totalorder %s267, 7
      %s271 = scalar_select %p270, %s267, 7
      %s272 = smul.addr %s269, 8
      %s273 = sadd.s32 %s271, %s272
      %s274 = smul.addr %s273, 8
      %s275 = scalar_lea.vmem %s5, %s274
      %p276 = scmp.lt.s32.totalorder %s20, 1
      %s277 = scalar_select %p276, %s20, 1
      %s278 = smul.addr %s277, 8
      %s279 = smul.addr %s278, 4
      %s280 = scalar_lea.vmem %s0, %s279
      %s281 = smul.u32 8, %s21
      %s282 = ssub.s32 9, %s281
      %p283 = scmp.lt.s32.totalorder %s282, 8
      %s284 = scalar_select %p283, %s282, 8
      %s285 = smul.u32 4, %s284
      %s286 = smul.u32 %s285, 2
      %p287 = scmp.lt.s32.totalorder %s20, 1
      %s288 = scalar_select %p287, %s20, 1
      %p289 = scmp.lt.s32.totalorder %s281, 8
      %s290 = scalar_select %p289, %s281, 8
      %s291 = smul.addr %s290, 2
      %s292 = smul.addr %s288, 18
      %s293 = sadd.s32 %s291, %s292
      %s294 = smul.addr %s293, 4
      %s295 = scalar_lea.vmem %s3, %s294
      %s296 = smul.u32 8, %s21
      %s297 = ssub.s32 9, %s296
      %p298 = scmp.lt.s32.totalorder %s297, 8
      %s299 = scalar_select %p298, %s297, 8
      %s300 = smul.u32 4, %s299
      %s301 = smul.u32 %s300, 2
      %s302 = smul.u32 8, %s21
      %p303 = scmp.lt.s32.totalorder %s20, 1
      %s304 = scalar_select %p303, %s20, 1
      %p305 = scmp.lt.s32.totalorder %s302, 7
      %s306 = scalar_select %p305, %s302, 7
      %s307 = smul.addr %s304, 8
      %s308 = sadd.s32 %s306, %s307
      %s309 = smul.addr %s308, 8
      %s310 = scalar_lea.vmem %s5, %s309
      %s311 = smul.u32 8, %s21
      %p313 = scmp.eq.s32.totalorder %s21, 0
      // Predicated region
      $region41: #{basic_block_forward.3} parent=39 // pred_check
        %p314 = pneg %p313
      $region42: #{basic_block_forward.3} parent=39 // pred_check_branch
        %316 = sbr.rel (%p314) target = $region44
      $region43: #{basic_block_forward.3} parent=39 // pred_region
        %v317 = vld [vmem:[%s280] sm:$0xf]
        %v318 = vld [vmem:[%s280 + $0x4] sm:$0xf]
        %v319 = vld [vmem:[%s280 + $0x8] sm:$0xf]
        %v320 = vld [vmem:[%s280 + $0xc] sm:$0xf]
        %v321 = vld [vmem:[%s280 + $0x10] sm:$0xf]
        %v322 = vld [vmem:[%s280 + $0x14] sm:$0xf]
        %v323 = vld [vmem:[%s280 + $0x18] sm:$0xf]
        %v324 = vld [vmem:[%s280 + $0x1c] sm:$0xf]
        %vm325 = vcmask 64512
        %326 = vst.msk [vmem:[#allocation2] sm:$0xff] %vm325, 0.0
        %vm327 = vcmask 58368
        %328 = vst.msk [vmem:[#allocation2 + $0x8] sm:$0x3] %vm327, 0.0
        %329 = vst.msk [vmem:[#allocation2 + $0x10] sm:$0xff] %vm325, 0.0
        %330 = vst.msk [vmem:[#allocation2 + $0x18] sm:$0x3] %vm327, 0.0
        %331 = vst.msk [vmem:[#allocation2 + $0x20] sm:$0xff] %vm325, 0.0
        %332 = vst.msk [vmem:[#allocation2 + $0x28] sm:$0x3] %vm327, 0.0
        %333 = vst.msk [vmem:[#allocation2 + $0x30] sm:$0xff] %vm325, 0.0
        %334 = vst.msk [vmem:[#allocation2 + $0x38] sm:$0x3] %vm327, 0.0
        %335 = vst.msk [vmem:[#allocation2 + $0x40] sm:$0xff] %vm325, 0.0
        %336 = vst.msk [vmem:[#allocation2 + $0x48] sm:$0x3] %vm327, 0.0
        %337 = vst.msk [vmem:[#allocation2 + $0x50] sm:$0xff] %vm325, 0.0
        %338 = vst.msk [vmem:[#allocation2 + $0x58] sm:$0x3] %vm327, 0.0
        %339 = vst.msk [vmem:[#allocation2 + $0x60] sm:$0xff] %vm325, 0.0
        %340 = vst.msk [vmem:[#allocation2 + $0x68] sm:$0x3] %vm327, 0.0
        %341 = vst.msk [vmem:[#allocation2 + $0x70] sm:$0xff] %vm325, 0.0
        %342 = vst.msk [vmem:[#allocation2 + $0x78] sm:$0x3] %vm327, 0.0
        %343 = vst.msk [vmem:[#allocation2 + $0x80] sm:$0xff] %vm325, 0.0
        %344 = vst.msk [vmem:[#allocation2 + $0x88] sm:$0x3] %vm327, 0.0
        %345 = vst.msk [vmem:[#allocation2 + $0x90] sm:$0xff] %vm325, 0.0
        %346 = vst.msk [vmem:[#allocation2 + $0x98] sm:$0x3] %vm327, 0.0
        %v347 = vunpack.c.l.bf16 %v317
        %v348 = vunpack.c.l.bf16 %v318
        %v349 = vunpack.c.l.bf16 %v319
        %v350 = vunpack.c.l.bf16 %v320
        %v351 = vunpack.c.l.bf16 %v321
        %v352 = vunpack.c.l.bf16 %v322
        %v353 = vunpack.c.l.bf16 %v323
        %v354 = vunpack.c.l.bf16 %v324
        %s355 = scalar_lea.vmem [#allocation2], 16
        %356 = vst.msk [vmem:[%s355 + $0x1] sm:$0xff] %vm325, %v347
        %357 = vst.msk [vmem:[%s355 + $0x11] sm:$0xff] %vm325, %v348
        %358 = vst.msk [vmem:[%s355 + $0x21] sm:$0xff] %vm325, %v349
        %359 = vst.msk [vmem:[%s355 + $0x31] sm:$0xff] %vm325, %v350
        %360 = vst.msk [vmem:[%s355 + $0x41] sm:$0xff] %vm325, %v351
        %361 = vst.msk [vmem:[%s355 + $0x51] sm:$0xff] %vm325, %v352
        %362 = vst.msk [vmem:[%s355 + $0x61] sm:$0xff] %vm325, %v353
        %363 = vst.msk [vmem:[%s355 + $0x71] sm:$0xff] %vm325, %v354
      $region44: #{basic_block_forward.3} parent=39 // pred_fallthru
        _
      %s364 = smul.u32 %s21, 8
      %s365 = smul.u32 %s364, 16
      %s366 = scalar_lea.vmem [#allocation2], %s365
      %v367 = vld [vmem:[%s366] sm:$0xff]
      %v368 = vld [vmem:[%s366 + $0x10] sm:$0xff]
      %v369 = vld [vmem:[%s366 + $0x20] sm:$0xff]
      %v370 = vld [vmem:[%s366 + $0x30] sm:$0xff]
      %v371 = vld [vmem:[%s366 + $0x40] sm:$0xff]
      %v372 = vld [vmem:[%s366 + $0x50] sm:$0xff]
      %v373 = vld [vmem:[%s366 + $0x60] sm:$0xff]
      %v374 = vld [vmem:[%s366 + $0x70] sm:$0xff]
      %v375 = vld [vmem:[%s366 + $0x1] sm:$0xff]
      %v376 = vld [vmem:[%s366 + $0x11] sm:$0xff]
      %v377 = vld [vmem:[%s366 + $0x21] sm:$0xff]
      %v378 = vld [vmem:[%s366 + $0x31] sm:$0xff]
      %v379 = vld [vmem:[%s366 + $0x41] sm:$0xff]
      %v380 = vld [vmem:[%s366 + $0x51] sm:$0xff]
      %v381 = vld [vmem:[%s366 + $0x61] sm:$0xff]
      %v382 = vld [vmem:[%s366 + $0x71] sm:$0xff]
      %v383 = vld [vmem:[%s366 + $0x2] sm:$0xff]
      %v384 = vld [vmem:[%s366 + $0x12] sm:$0xff]
      %v385 = vld [vmem:[%s366 + $0x22] sm:$0xff]
      %v386 = vld [vmem:[%s366 + $0x32] sm:$0xff]
      %v387 = vld [vmem:[%s366 + $0x42] sm:$0xff]
      %v388 = vld [vmem:[%s366 + $0x52] sm:$0xff]
      %v389 = vld [vmem:[%s366 + $0x62] sm:$0xff]
      %v390 = vld [vmem:[%s366 + $0x72] sm:$0xff]
      %s391 = sadd.s32 %s364, 1
      %s392 = smul.u32 %s391, 16
      %s393 = scalar_lea.vmem [#allocation2], %s392
      %v394 = vld [vmem:[%s393] sm:$0xff]
      %v395 = vld [vmem:[%s393 + $0x10] sm:$0xff]
      %v396 = vld [vmem:[%s393 + $0x20] sm:$0xff]
      %v397 = vld [vmem:[%s393 + $0x30] sm:$0xff]
      %v398 = vld [vmem:[%s393 + $0x40] sm:$0xff]
      %v399 = vld [vmem:[%s393 + $0x50] sm:$0xff]
      %v400 = vld [vmem:[%s393 + $0x60] sm:$0xff]
      %v401 = vld [vmem:[%s393 + $0x70] sm:$0xff]
      %v402 = vld [vmem:[%s393 + $0x1] sm:$0xff]
      %v403 = vld [vmem:[%s393 + $0x11] sm:$0xff]
      %v404 = vld [vmem:[%s393 + $0x21] sm:$0xff]
      %v405 = vld [vmem:[%s393 + $0x31] sm:$0xff]
      %v406 = vld [vmem:[%s393 + $0x41] sm:$0xff]
      %v407 = vld [vmem:[%s393 + $0x51] sm:$0xff]
      %v408 = vld [vmem:[%s393 + $0x61] sm:$0xff]
      %v409 = vld [vmem:[%s393 + $0x71] sm:$0xff]
      %v410 = vld [vmem:[%s393 + $0x2] sm:$0xff]
      %v411 = vld [vmem:[%s393 + $0x12] sm:$0xff]
      %v412 = vld [vmem:[%s393 + $0x22] sm:$0xff]
      %v413 = vld [vmem:[%s393 + $0x32] sm:$0xff]
      %v414 = vld [vmem:[%s393 + $0x42] sm:$0xff]
      %v415 = vld [vmem:[%s393 + $0x52] sm:$0xff]
      %v416 = vld [vmem:[%s393 + $0x62] sm:$0xff]
      %v417 = vld [vmem:[%s393 + $0x72] sm:$0xff]
      %s418 = sadd.s32 %s364, 2
      %s419 = smul.u32 %s418, 16
      %s420 = scalar_lea.vmem [#allocation2], %s419
      %v421 = vld [vmem:[%s420] sm:$0xff]
      %v422 = vld [vmem:[%s420 + $0x10] sm:$0xff]
      %v423 = vld [vmem:[%s420 + $0x20] sm:$0xff]
      %v424 = vld [vmem:[%s420 + $0x30] sm:$0xff]
      %v425 = vld [vmem:[%s420 + $0x40] sm:$0xff]
      %v426 = vld [vmem:[%s420 + $0x50] sm:$0xff]
      %v427 = vld [vmem:[%s420 + $0x60] sm:$0xff]
      %v428 = vld [vmem:[%s420 + $0x70] sm:$0xff]
      %v429 = vld [vmem:[%s420 + $0x1] sm:$0xff]
      %v430 = vld [vmem:[%s420 + $0x11] sm:$0xff]
      %v431 = vld [vmem:[%s420 + $0x21] sm:$0xff]
      %v432 = vld [vmem:[%s420 + $0x31] sm:$0xff]
      %v433 = vld [vmem:[%s420 + $0x41] sm:$0xff]
      %v434 = vld [vmem:[%s420 + $0x51] sm:$0xff]
      %v435 = vld [vmem:[%s420 + $0x61] sm:$0xff]
      %v436 = vld [vmem:[%s420 + $0x71] sm:$0xff]
      %v437 = vld [vmem:[%s420 + $0x2] sm:$0xff]
      %v438 = vld [vmem:[%s420 + $0x12] sm:$0xff]
      %v439 = vld [vmem:[%s420 + $0x22] sm:$0xff]
      %v440 = vld [vmem:[%s420 + $0x32] sm:$0xff]
      %v441 = vld [vmem:[%s420 + $0x42] sm:$0xff]
      %v442 = vld [vmem:[%s420 + $0x52] sm:$0xff]
      %v443 = vld [vmem:[%s420 + $0x62] sm:$0xff]
      %v444 = vld [vmem:[%s420 + $0x72] sm:$0xff]
      %453 = vrot.lane.b32.xlu0 %v375, 8
      %v454 = vpop.permute.xlu0 %453
      %455 = vrot.lane.b32.xlu0 %v376, 8
      %v456 = vpop.permute.xlu0 %455
      %457 = vrot.lane.b32.xlu0 %v377, 8
      %v458 = vpop.permute.xlu0 %457
      %459 = vrot.lane.b32.xlu0 %v378, 8
      %v460 = vpop.permute.xlu0 %459
      %461 = vrot.lane.b32.xlu0 %v379, 8
      %v462 = vpop.permute.xlu0 %461
      %463 = vrot.lane.b32.xlu0 %v380, 8
      %v464 = vpop.permute.xlu0 %463
      %465 = vrot.lane.b32.xlu0 %v381, 8
      %v466 = vpop.permute.xlu0 %465
      %467 = vrot.lane.b32.xlu0 %v382, 8
      %v468 = vpop.permute.xlu0 %467
      %485 = vrot.lane.b32.xlu0 %v383, 16
      %v486 = vpop.permute.xlu0 %485
      %487 = vrot.lane.b32.xlu0 %v384, 16
      %v488 = vpop.permute.xlu0 %487
      %489 = vrot.lane.b32.xlu0 %v385, 16
      %v490 = vpop.permute.xlu0 %489
      %491 = vrot.lane.b32.xlu0 %v386, 16
      %v492 = vpop.permute.xlu0 %491
      %493 = vrot.lane.b32.xlu0 %v387, 16
      %v494 = vpop.permute.xlu0 %493
      %495 = vrot.lane.b32.xlu0 %v388, 16
      %v496 = vpop.permute.xlu0 %495
      %497 = vrot.lane.b32.xlu0 %v389, 16
      %v498 = vpop.permute.xlu0 %497
      %499 = vrot.lane.b32.xlu0 %v390, 16
      %v500 = vpop.permute.xlu0 %499
      %517 = vrot.lane.b32.xlu0 %v394, 24
      %v518 = vpop.permute.xlu0 %517
      %519 = vrot.lane.b32.xlu0 %v395, 24
      %v520 = vpop.permute.xlu0 %519
      %521 = vrot.lane.b32.xlu0 %v396, 24
      %v522 = vpop.permute.xlu0 %521
      %523 = vrot.lane.b32.xlu0 %v397, 24
      %v524 = vpop.permute.xlu0 %523
      %525 = vrot.lane.b32.xlu0 %v398, 24
      %v526 = vpop.permute.xlu0 %525
      %527 = vrot.lane.b32.xlu0 %v399, 24
      %v528 = vpop.permute.xlu0 %527
      %529 = vrot.lane.b32.xlu0 %v400, 24
      %v530 = vpop.permute.xlu0 %529
      %531 = vrot.lane.b32.xlu0 %v401, 24
      %v532 = vpop.permute.xlu0 %531
      %549 = vrot.lane.b32.xlu0 %v402, 32
      %v550 = vpop.permute.xlu0 %549
      %551 = vrot.lane.b32.xlu0 %v403, 32
      %v552 = vpop.permute.xlu0 %551
      %553 = vrot.lane.b32.xlu0 %v404, 32
      %v554 = vpop.permute.xlu0 %553
      %555 = vrot.lane.b32.xlu0 %v405, 32
      %v556 = vpop.permute.xlu0 %555
      %557 = vrot.lane.b32.xlu0 %v406, 32
      %v558 = vpop.permute.xlu0 %557
      %559 = vrot.lane.b32.xlu0 %v407, 32
      %v560 = vpop.permute.xlu0 %559
      %561 = vrot.lane.b32.xlu0 %v408, 32
      %v562 = vpop.permute.xlu0 %561
      %563 = vrot.lane.b32.xlu0 %v409, 32
      %v564 = vpop.permute.xlu0 %563
      %581 = vrot.lane.b32.xlu0 %v410, 40
      %v582 = vpop.permute.xlu0 %581
      %583 = vrot.lane.b32.xlu0 %v411, 40
      %v584 = vpop.permute.xlu0 %583
      %585 = vrot.lane.b32.xlu0 %v412, 40
      %v586 = vpop.permute.xlu0 %585
      %587 = vrot.lane.b32.xlu0 %v413, 40
      %v588 = vpop.permute.xlu0 %587
      %589 = vrot.lane.b32.xlu0 %v414, 40
      %v590 = vpop.permute.xlu0 %589
      %591 = vrot.lane.b32.xlu0 %v415, 40
      %v592 = vpop.permute.xlu0 %591
      %593 = vrot.lane.b32.xlu0 %v416, 40
      %v594 = vpop.permute.xlu0 %593
      %595 = vrot.lane.b32.xlu0 %v417, 40
      %v596 = vpop.permute.xlu0 %595
      %613 = vrot.lane.b32.xlu0 %v421, 48
      %v614 = vpop.permute.xlu0 %613
      %615 = vrot.lane.b32.xlu0 %v422, 48
      %v616 = vpop.permute.xlu0 %615
      %617 = vrot.lane.b32.xlu0 %v423, 48
      %v618 = vpop.permute.xlu0 %617
      %619 = vrot.lane.b32.xlu0 %v424, 48
      %v620 = vpop.permute.xlu0 %619
      %621 = vrot.lane.b32.xlu0 %v425, 48
      %v622 = vpop.permute.xlu0 %621
      %623 = vrot.lane.b32.xlu0 %v426, 48
      %v624 = vpop.permute.xlu0 %623
      %625 = vrot.lane.b32.xlu0 %v427, 48
      %v626 = vpop.permute.xlu0 %625
      %627 = vrot.lane.b32.xlu0 %v428, 48
      %v628 = vpop.permute.xlu0 %627
      %645 = vrot.lane.b32.xlu0 %v429, 56
      %v646 = vpop.permute.xlu0 %645
      %647 = vrot.lane.b32.xlu0 %v430, 56
      %v648 = vpop.permute.xlu0 %647
      %649 = vrot.lane.b32.xlu0 %v431, 56
      %v650 = vpop.permute.xlu0 %649
      %651 = vrot.lane.b32.xlu0 %v432, 56
      %v652 = vpop.permute.xlu0 %651
      %653 = vrot.lane.b32.xlu0 %v433, 56
      %v654 = vpop.permute.xlu0 %653
      %655 = vrot.lane.b32.xlu0 %v434, 56
      %v656 = vpop.permute.xlu0 %655
      %657 = vrot.lane.b32.xlu0 %v435, 56
      %v658 = vpop.permute.xlu0 %657
      %659 = vrot.lane.b32.xlu0 %v436, 56
      %v660 = vpop.permute.xlu0 %659
      %677 = vrot.lane.b32.xlu0 %v437, 64
      %v678 = vpop.permute.xlu0 %677
      %679 = vrot.lane.b32.xlu0 %v438, 64
      %v680 = vpop.permute.xlu0 %679
      %681 = vrot.lane.b32.xlu0 %v439, 64
      %v682 = vpop.permute.xlu0 %681
      %683 = vrot.lane.b32.xlu0 %v440, 64
      %v684 = vpop.permute.xlu0 %683
      %685 = vrot.lane.b32.xlu0 %v441, 64
      %v686 = vpop.permute.xlu0 %685
      %687 = vrot.lane.b32.xlu0 %v442, 64
      %v688 = vpop.permute.xlu0 %687
      %689 = vrot.lane.b32.xlu0 %v443, 64
      %v690 = vpop.permute.xlu0 %689
      %691 = vrot.lane.b32.xlu0 %v444, 64
      %v692 = vpop.permute.xlu0 %691
      %vm701 = vcmask 64512
      %v702 = vsel %vm701, %v367, %v454
      %v703 = vsel %vm701, %v368, %v456
      %v704 = vsel %vm701, %v369, %v458
      %v705 = vsel %vm701, %v370, %v460
      %v706 = vsel %vm701, %v371, %v462
      %v707 = vsel %vm701, %v372, %v464
      %v708 = vsel %vm701, %v373, %v466
      %v709 = vsel %vm701, %v374, %v468
      %vm710 = vcmask 130048
      %v711 = vsel %vm710, %v702, %v486
      %v712 = vsel %vm710, %v703, %v488
      %v713 = vsel %vm710, %v704, %v490
      %v714 = vsel %vm710, %v705, %v492
      %v715 = vsel %vm710, %v706, %v494
      %v716 = vsel %vm710, %v707, %v496
      %v717 = vsel %vm710, %v708, %v498
      %v718 = vsel %vm710, %v709, %v500
      %vm719 = vcmask 195584
      %v720 = vsel %vm719, %v711, %v518
      %v721 = vsel %vm719, %v712, %v520
      %v722 = vsel %vm719, %v713, %v522
      %v723 = vsel %vm719, %v714, %v524
      %v724 = vsel %vm719, %v715, %v526
      %v725 = vsel %vm719, %v716, %v528
      %v726 = vsel %vm719, %v717, %v530
      %v727 = vsel %vm719, %v718, %v532
      %vm728 = vcmask 261120
      %v729 = vsel %vm728, %v720, %v550
      %v730 = vsel %vm728, %v721, %v552
      %v731 = vsel %vm728, %v722, %v554
      %v732 = vsel %vm728, %v723, %v556
      %v733 = vsel %vm728, %v724, %v558
      %v734 = vsel %vm728, %v725, %v560
      %v735 = vsel %vm728, %v726, %v562
      %v736 = vsel %vm728, %v727, %v564
      %vm737 = vcmask 326656
      %v738 = vsel %vm737, %v729, %v582
      %v739 = vsel %vm737, %v730, %v584
      %v740 = vsel %vm737, %v731, %v586
      %v741 = vsel %vm737, %v732, %v588
      %v742 = vsel %vm737, %v733, %v590
      %v743 = vsel %vm737, %v734, %v592
      %v744 = vsel %vm737, %v735, %v594
      %v745 = vsel %vm737, %v736, %v596
      %vm746 = vcmask 392192
      %v747 = vsel %vm746, %v738, %v614
      %v748 = vsel %vm746, %v739, %v616
      %v749 = vsel %vm746, %v740, %v618
      %v750 = vsel %vm746, %v741, %v620
      %v751 = vsel %vm746, %v742, %v622
      %v752 = vsel %vm746, %v743, %v624
      %v753 = vsel %vm746, %v744, %v626
      %v754 = vsel %vm746, %v745, %v628
      %vm755 = vcmask 457728
      %v756 = vsel %vm755, %v747, %v646
      %v757 = vsel %vm755, %v748, %v648
      %v758 = vsel %vm755, %v749, %v650
      %v759 = vsel %vm755, %v750, %v652
      %v760 = vsel %vm755, %v751, %v654
      %v761 = vsel %vm755, %v752, %v656
      %v762 = vsel %vm755, %v753, %v658
      %v763 = vsel %vm755, %v754, %v660
      %vm764 = vcmask 523264
      %v765 = vsel %vm764, %v756, %v678
      %v766 = vsel %vm764, %v757, %v680
      %v767 = vsel %vm764, %v758, %v682
      %v768 = vsel %vm764, %v759, %v684
      %v769 = vsel %vm764, %v760, %v686
      %v770 = vsel %vm764, %v761, %v688
      %v771 = vsel %vm764, %v762, %v690
      %v772 = vsel %vm764, %v763, %v692
      %v773 = vpack.c.bf16 %v766, %v765
      %v774 = vpack.c.bf16 %v768, %v767
      %v775 = vpack.c.bf16 %v770, %v769
      %v776 = vpack.c.bf16 %v772, %v771
      %v777 = vld [vmem:[%s1] sm:$0xf]
      %v778 = vld [vmem:[%s1 + $0x4] sm:$0xf]
      %v779 = vld [vmem:[%s1 + $0x8] sm:$0xf]
      %v780 = vld [vmem:[%s1 + $0xc] sm:$0xf]
      %v781 = vld [vmem:[%s1 + $0x10] sm:$0xf]
      %v782 = vld [vmem:[%s1 + $0x14] sm:$0xf]
      %v783 = vld [vmem:[%s1 + $0x18] sm:$0xf]
      %v784 = vld [vmem:[%s1 + $0x1c] sm:$0xf]
      %v785 = vld [vmem:[%s1 + $0x20] sm:$0xf]
      %v786 = vld [vmem:[%s2] sm:$0x1]
      %v788 = vperm.slane %v786, 0
      %v799 = vunpack.c.l.b16 %v777
      %v800 = vunpack.c.l.b16 %v778
      %v801 = vunpack.c.l.b16 %v779
      %v802 = vunpack.c.l.b16 %v780
      %v803 = vunpack.c.l.b16 %v781
      %v804 = vunpack.c.l.b16 %v782
      %v805 = vunpack.c.l.b16 %v783
      %v806 = vunpack.c.l.b16 %v784
      %v807 = vunpack.c.l.b16 %v785
      %v808 = vpack.c.b16 %v800, %v799
      %v809 = vpack.c.b16 %v802, %v801
      %v810 = vpack.c.b16 %v804, %v803
      %v811 = vpack.c.b16 %v806, %v805
      %v812 = vpack.c.b16 %v807, %v807
      %vm817 = vcmask 588800
      %v819 = vsel %vm817, %v773, 0
      %v822 = vsel %vm817, %v774, 0
      %v825 = vsel %vm817, %v775, 0
      %v828 = vsel %vm817, %v776, 0
      %vm830 = vcmask 1043456
      %v832 = vsel %vm830, %v812, 0
      %834 = vmatpush.bf16.msra.mxu0 0
      %835 = vmatpush.bf16.msra.mxu0 0
      %836 = vmatpush.bf16.msra.mxu0 0
      %837 = vmatpush.bf16.msra.mxu0 %v832
      %838 = vmatpush.bf16.msra.mxu0 %v811
      %839 = vmatpush.bf16.msra.mxu0 %v810
      %840 = vmatpush.bf16.msra.mxu0 %v809
      %841 = vmatpush.bf16.msra.mxu0 %v808
      %842 = vmatmul.bf16.gmra.mxu0 %v819
      %v843 = vpop.f32.mrf.mxu0
      %v844 = vadd.f32 %v788, %v843
      %v845 = vpop.f32.mrf.mxu0
      %v846 = vadd.f32 %v788, %v845
      %847 = vmatmul.bf16.gmra.mxu0 %v822
      %v848 = vpop.f32.mrf.mxu0
      %v849 = vadd.f32 %v788, %v848
      %v850 = vpop.f32.mrf.mxu0
      %v851 = vadd.f32 %v788, %v850
      %852 = vmatmul.bf16.gmra.mxu0 %v825
      %v853 = vpop.f32.mrf.mxu0
      %v854 = vadd.f32 %v788, %v853
      %v855 = vpop.f32.mrf.mxu0
      %v856 = vadd.f32 %v788, %v855
      %857 = vmatmul.bf16.gmra.mxu0 %v828
      %v858 = vpop.f32.mrf.mxu0
      %v859 = vadd.f32 %v788, %v858
      %v860 = vpop.f32.mrf.mxu0
      %v861 = vadd.f32 %v788, %v860
      %862 = vdwg.mxu0
      %v863 = vld [vmem:[%s295] sm:$0xf]
      %v864 = vld [vmem:[%s295 + $0x8] sm:$0xf]
      %v865 = vld [vmem:[%s295 + $0x10] sm:$0xf]
      %v866 = vld [vmem:[%s295 + $0x18] sm:$0xf]
      %v867 = vld [vmem:[%s295 + $0x20] sm:$0xf]
      %v868 = vld [vmem:[%s295 + $0x28] sm:$0xf]
      %v869 = vld [vmem:[%s295 + $0x30] sm:$0xf]
      %v870 = vld [vmem:[%s295 + $0x38] sm:$0xf]
      %v871 = vld [vmem:[%s4] sm:$0x3]
      %v880 = vunpack.c.l.b16 %v863
      %v881 = vunpack.c.l.b16 %v864
      %v882 = vunpack.c.l.b16 %v865
      %v883 = vunpack.c.l.b16 %v866
      %v884 = vunpack.c.l.b16 %v867
      %v885 = vunpack.c.l.b16 %v868
      %v886 = vunpack.c.l.b16 %v869
      %v887 = vunpack.c.l.b16 %v870
      %v888 = vpack.c.b16 %v881, %v880
      %v889 = vpack.c.b16 %v883, %v882
      %v890 = vpack.c.b16 %v885, %v884
      %v891 = vpack.c.b16 %v887, %v886
      %vm892 = vcmask 31744
      %v894 = vsel %vm892, %v888, 0
      %v897 = vsel %vm892, %v889, 0
      %v900 = vsel %vm892, %v890, 0
      %v903 = vsel %vm892, %v891, 0
      %vm905 = vcmask 1041408
      %v907 = vsel %vm905, %v871, 0
      %909 = vmatpush.bf16.msra.mxu0 0
      %910 = vmatpush.bf16.msra.mxu0 0
      %911 = vmatpush.bf16.msra.mxu0 0
      %912 = vmatpush.bf16.msra.mxu0 0
      %913 = vmatpush.bf16.msra.mxu0 0
      %914 = vmatpush.bf16.msra.mxu0 0
      %915 = vmatpush.bf16.msra.mxu0 0
      %916 = vmatpush.bf16.msra.mxu0 %v907
      %917 = vmatmul.bf16.gmra.mxu0 %v894
      %v918 = vpop.f32.mrf.mxu0
      %v919 = vadd.f32 0.0, %v918
      %v920 = vpop.f32.mrf.mxu0
      %v921 = vadd.f32 0.0, %v920
      %922 = vmatmul.bf16.gmra.mxu0 %v897
      %v923 = vpop.f32.mrf.mxu0
      %v924 = vadd.f32 0.0, %v923
      %v925 = vpop.f32.mrf.mxu0
      %v926 = vadd.f32 0.0, %v925
      %927 = vmatmul.bf16.gmra.mxu0 %v900
      %v928 = vpop.f32.mrf.mxu0
      %v929 = vadd.f32 0.0, %v928
      %v930 = vpop.f32.mrf.mxu0
      %v931 = vadd.f32 0.0, %v930
      %932 = vmatmul.bf16.gmra.mxu0 %v903
      %v933 = vpop.f32.mrf.mxu0
      %v934 = vadd.f32 0.0, %v933
      %v935 = vpop.f32.mrf.mxu0
      %v936 = vadd.f32 0.0, %v935
      %937 = vdwg.mxu0
      %v938 = vadd.f32 %v844, %v919
      %v939 = vadd.f32 %v846, %v921
      %v940 = vadd.f32 %v849, %v924
      %v941 = vadd.f32 %v851, %v926
      %v942 = vadd.f32 %v854, %v929
      %v943 = vadd.f32 %v856, %v931
      %v944 = vadd.f32 %v859, %v934
      %v945 = vadd.f32 %v861, %v936
      %v946 = vmax.f32 %v938, 0.0
      %v947 = vmax.f32 %v939, 0.0
      %v948 = vmax.f32 %v940, 0.0
      %v949 = vmax.f32 %v941, 0.0
      %v950 = vmax.f32 %v942, 0.0
      %v951 = vmax.f32 %v943, 0.0
      %v952 = vmax.f32 %v944, 0.0
      %v953 = vmax.f32 %v945, 0.0
      %954 = vst.msk [vmem:[%s310] sm:$0xff] %vm701, %v946
      %955 = vst.msk [vmem:[%s310 + $0x8] sm:$0xff] %vm701, %v947
      %956 = vst.msk [vmem:[%s310 + $0x10] sm:$0xff] %vm701, %v948
      %957 = vst.msk [vmem:[%s310 + $0x18] sm:$0xff] %vm701, %v949
      %958 = vst.msk [vmem:[%s310 + $0x20] sm:$0xff] %vm701, %v950
      %959 = vst.msk [vmem:[%s310 + $0x28] sm:$0xff] %vm701, %v951
      %960 = vst.msk [vmem:[%s310 + $0x30] sm:$0xff] %vm701, %v952
      %961 = vst.msk [vmem:[%s310 + $0x38] sm:$0xff] %vm701, %v953
      %s962 = smul.u32 8, %s21
      %p963 = scmp.lt.s32.totalorder %s20, 1
      %s964 = scalar_select %p963, %s20, 1
      %p965 = scmp.lt.s32.totalorder %s962, 7
      %s966 = scalar_select %p965, %s962, 7
      %s967 = smul.addr %s964, 8
      %s968 = sadd.s32 %s966, %s967
      %s969 = smul.addr %s968, 8
      %s970 = scalar_lea.vmem %s5, %s969
      // Predicated region
      $region45: #{basic_block_forward.3} parent=39 // pred_check
        %p971 = pneg %p165
      $region46: #{basic_block_forward.3} parent=39 // pred_check_branch
        %973 = sbr.rel (%p971) target = $region48
      $region47: #{basic_block_forward.3} parent=39 // pred_region
        %s974 = smul.u32 8, %s21
      $region48: #{basic_block_forward.3} parent=39 // pred_fallthru
        _
    $region40: #{basic_block_forward.3} parent=5 // pred_fallthru
      _
    %p975 = scmp.le.s32.totalorder 2, %s11
    // Predicated region
    $region49: #{basic_block_forward.3} parent=5 // pred_check
      %p976 = pneg %p975
    $region50: #{basic_block_forward.3} parent=5 // pred_check_branch
      %978 = sbr.rel (%p976) target = $region52
    $region51: #{basic_block_forward.3} parent=5 // pred_region
      %s979 = ssub.s32 %s11, 2
      // Predicated region
      $region53: #{basic_block_forward.3} parent=51 // pred_check
        %p980 = pneg %p171
      $region54: #{basic_block_forward.3} parent=51 // pred_check_branch
        %982 = sbr.rel (%p980) target = $region56
      $region55: #{basic_block_forward.3} parent=51 // pred_region
        %s983 = smul.u32 8, %s23
        %p984 = scmp.lt.s32.totalorder %s22, 1
        %s985 = scalar_select %p984, %s22, 1
        %p986 = scmp.lt.s32.totalorder %s983, 7
        %s987 = scalar_select %p986, %s983, 7
        %s988 = smul.addr %s985, 8
        %s989 = sadd.s32 %s987, %s988
        %s990 = smul.addr %s989, 8
        %s991 = scalar_lea.vmem %s5, %s990
      $region56: #{basic_block_forward.3} parent=51 // pred_fallthru
        _
    $region52: #{basic_block_forward.3} parent=5 // pred_fallthru
      _
  $region6: #{basic_block_forward.3} parent=0 // loop_footer
    %s15 = sadd.s32 1, %s11
  $region7: #{basic_block_forward.3} parent=0 // loop_footer_branch
    %10 = sbr.rel target = $region3
  $region8: #{basic_block_forward.3} parent=0 // loop_exit
    _

// kernel: basic_block_forward.2
$region0: #{basic_block_forward.2}
  #allocation0 [shape = 'u32[]', space=smem, size = 0x4, offset = 0x4, fixed_abs, tag = 'smem constant byte address 0x4 - core index']
  #allocation1 [shape = 'u32[72,128]{1,0:T(1,128)}', space=vmem, size = 0x9000, scoped, tag = 'internal scratch']
  %s0 = inlined_call_operand.vmem [shape: bf16[2,9,9,4], index: 0, kind: input, shape index: {}]
  %s1 = inlined_call_operand.vmem [shape: bf16[2,9,9,4], index: 1, kind: input, shape index: {}]
  %s2 = inlined_call_operand.vmem [shape: bf16[2,9,9,4], index: 2, kind: input, shape index: {}]
  %s3 = inlined_call_operand.vmem [shape: bf16[2,9,9,4], index: 3, kind: input, shape index: {}]
  %s4 = inlined_call_operand.vmem [shape: bf16[36,8], index: 4, kind: input, shape index: {}]
  %s5 = inlined_call_operand.vmem [shape: f32[1,8], index: 5, kind: input, shape index: {}]
  %s6 = inlined_call_operand.vmem [shape: bf16[2,64,8], index: 6, kind: output, shape index: {}]
  %s7 = sld [smem:[#allocation0]]
  $region57: #{basic_block_forward.2} parent=0
    _
  %s9 = ssub.s32 1, %s7
  %s10 = scalar_select 0, %s9, %s7
  loop: start=0, step=1, limit=4
  $region2: #{basic_block_forward.2} parent=0 // loop_pre_header
    _
  $region3: #{basic_block_forward.2} parent=0 // loop_header
    %s12 = sphi 0, %s16
    %p13 = scmp.ge.s32.totalorder %s12, 4
    %s19 = sphi 0, %s31
    %s20 = sphi 0, %s27
    %s21 = sphi 0, %s19
    %s22 = sphi 0, %s20
    %s23 = sphi 0, %s21
    %s24 = sphi 0, %s22
    %s34 = sphi 0, %s36
    %s37 = sphi 0, %s34
    %s38 = sphi 0, %s37
    %s54 = sphi 0, %s38
    %s60 = sphi 0, %s62
    %s63 = sphi 0, %s60
    %s64 = sphi 0, %s63
    %s80 = sphi 0, %s64
    %s86 = sphi 0, %s88
    %s89 = sphi 0, %s86
    %s90 = sphi 0, %s89
    %s106 = sphi 0, %s90
    %s112 = sphi 0, %s114
    %s115 = sphi 0, %s112
    %s116 = sphi 0, %s115
    %s132 = sphi 0, %s116
    %s136 = sphi 0, %s136
    %s138 = sphi 0, %s136
    %s139 = sphi 0, %s138
    %s153 = sphi 0, %s139
    %s157 = sphi 0, %s157
    %s159 = sphi 0, %s157
    %s160 = sphi 0, %s159
    %s174 = sphi 0, %s160
    %s182 = sphi 0, %s184
    %s185 = sphi 0, %s182
    %s186 = sphi 0, %s185
    %s202 = sphi 0, %s186
  $region4: #{basic_block_forward.2} parent=0 // loop_header_branch
    %15 = sbr.rel (%p13) target = $region8
  $region5: #{basic_block_forward.2} parent=0 // loop_body
    %s17 = ssub.s32 %s12, 1
    %s18 = ssub.s32 %s12, 2
    %s25 = sadd.s32 1, %s20
    %p26 = scmp.ge.s32.totalorder %s25, 1
    %s27 = scalar_select %p26, 0, %s25
    %s28 = sadd.s32 1, %s19
    %s29 = scalar_select %p26, %s28, %s19
    %p30 = scmp.ge.s32.totalorder %s29, 2
    %s31 = scalar_select %p30, 0, %s29
    %s32 = ssub.s32 %s19, %s31
    %p33 = scmp.eq.s32.totalorder %s32, 0
    %s35 = sadd.s32 %s34, 1
    %s36 = scalar_select %p33, %s34, %s35
    %p39 = pneg %p33
    %p40 = scmp.eq.s32.totalorder %s12, 1
    %p41 = por %p39, %p40
    %p42 = scmp.ne.s32.totalorder %s34, %s37
    %p43 = scmp.eq.s32.totalorder %s12, 0
    %p44 = por %p42, %p43
    %p45 = scmp.ne.s32.totalorder %s34, %s37
    %p46 = scmp.eq.s32.totalorder %s17, 1
    %p47 = por %p45, %p46
    %p48 = scmp.ne.s32.totalorder %s37, %s38
    %p49 = scmp.eq.s32.totalorder %s17, 0
    %p50 = por %p48, %p49
    %p51 = scmp.ne.s32.totalorder %s37, %s38
    %p52 = scmp.eq.s32.totalorder %s18, 1
    %p53 = por %p51, %p52
    %p55 = scmp.ne.s32.totalorder %s38, %s54
    %p56 = scmp.eq.s32.totalorder %s18, 0
    %p57 = por %p55, %p56
    %s58 = ssub.s32 %s19, %s31
    %p59 = scmp.eq.s32.totalorder %s58, 0
    %s61 = sadd.s32 %s60, 1
    %s62 = scalar_select %p59, %s60, %s61
    %p65 = pneg %p59
    %p66 = scmp.eq.s32.totalorder %s12, 1
    %p67 = por %p65, %p66
    %p68 = scmp.ne.s32.totalorder %s60, %s63
    %p69 = scmp.eq.s32.totalorder %s12, 0
    %p70 = por %p68, %p69
    %p71 = scmp.ne.s32.totalorder %s60, %s63
    %p72 = scmp.eq.s32.totalorder %s17, 1
    %p73 = por %p71, %p72
    %p74 = scmp.ne.s32.totalorder %s63, %s64
    %p75 = scmp.eq.s32.totalorder %s17, 0
    %p76 = por %p74, %p75
    %p77 = scmp.ne.s32.totalorder %s63, %s64
    %p78 = scmp.eq.s32.totalorder %s18, 1
    %p79 = por %p77, %p78
    %p81 = scmp.ne.s32.totalorder %s64, %s80
    %p82 = scmp.eq.s32.totalorder %s18, 0
    %p83 = por %p81, %p82
    %s84 = ssub.s32 %s19, %s31
    %p85 = scmp.eq.s32.totalorder %s84, 0
    %s87 = sadd.s32 %s86, 1
    %s88 = scalar_select %p85, %s86, %s87
    %p91 = pneg %p85
    %p92 = scmp.eq.s32.totalorder %s12, 1
    %p93 = por %p91, %p92
    %p94 = scmp.ne.s32.totalorder %s86, %s89
    %p95 = scmp.eq.s32.totalorder %s12, 0
    %p96 = por %p94, %p95
    %p97 = scmp.ne.s32.totalorder %s86, %s89
    %p98 = scmp.eq.s32.totalorder %s17, 1
    %p99 = por %p97, %p98
    %p100 = scmp.ne.s32.totalorder %s89, %s90
    %p101 = scmp.eq.s32.totalorder %s17, 0
    %p102 = por %p100, %p101
    %p103 = scmp.ne.s32.totalorder %s89, %s90
    %p104 = scmp.eq.s32.totalorder %s18, 1
    %p105 = por %p103, %p104
    %p107 = scmp.ne.s32.totalorder %s90, %s106
    %p108 = scmp.eq.s32.totalorder %s18, 0
    %p109 = por %p107, %p108
    %s110 = ssub.s32 %s19, %s31
    %p111 = scmp.eq.s32.totalorder %s110, 0
    %s113 = sadd.s32 %s112, 1
    %s114 = scalar_select %p111, %s112, %s113
    %p117 = pneg %p111
    %p118 = scmp.eq.s32.totalorder %s12, 1
    %p119 = por %p117, %p118
    %p120 = scmp.ne.s32.totalorder %s112, %s115
    %p121 = scmp.eq.s32.totalorder %s12, 0
    %p122 = por %p120, %p121
    %p123 = scmp.ne.s32.totalorder %s112, %s115
    %p124 = scmp.eq.s32.totalorder %s17, 1
    %p125 = por %p123, %p124
    %p126 = scmp.ne.s32.totalorder %s115, %s116
    %p127 = scmp.eq.s32.totalorder %s17, 0
    %p128 = por %p126, %p127
    %p129 = scmp.ne.s32.totalorder %s115, %s116
    %p130 = scmp.eq.s32.totalorder %s18, 1
    %p131 = por %p129, %p130
    %p133 = scmp.ne.s32.totalorder %s116, %s132
    %p134 = scmp.eq.s32.totalorder %s18, 0
    %p135 = por %p133, %p134
    %s137 = sadd.s32 %s136, 1
    %p140 = scmp.eq.s32.totalorder %s12, 1
    %p141 = scmp.ne.s32.totalorder %s136, %s138
    %p142 = scmp.eq.s32.totalorder %s12, 0
    %p143 = por %p141, %p142
    %p144 = scmp.ne.s32.totalorder %s136, %s138
    %p145 = scmp.eq.s32.totalorder %s17, 1
    %p146 = por %p144, %p145
    %p147 = scmp.ne.s32.totalorder %s138, %s139
    %p148 = scmp.eq.s32.totalorder %s17, 0
    %p149 = por %p147, %p148
    %p150 = scmp.ne.s32.totalorder %s138, %s139
    %p151 = scmp.eq.s32.totalorder %s18, 1
    %p152 = por %p150, %p151
    %p154 = scmp.ne.s32.totalorder %s139, %s153
    %p155 = scmp.eq.s32.totalorder %s18, 0
    %p156 = por %p154, %p155
    %s158 = sadd.s32 %s157, 1
    %p161 = scmp.eq.s32.totalorder %s12, 1
    %p162 = scmp.ne.s32.totalorder %s157, %s159
    %p163 = scmp.eq.s32.totalorder %s12, 0
    %p164 = por %p162, %p163
    %p165 = scmp.ne.s32.totalorder %s157, %s159
    %p166 = scmp.eq.s32.totalorder %s17, 1
    %p167 = por %p165, %p166
    %p168 = scmp.ne.s32.totalorder %s159, %s160
    %p169 = scmp.eq.s32.totalorder %s17, 0
    %p170 = por %p168, %p169
    %p171 = scmp.ne.s32.totalorder %s159, %s160
    %p172 = scmp.eq.s32.totalorder %s18, 1
    %p173 = por %p171, %p172
    %p175 = scmp.ne.s32.totalorder %s160, %s174
    %p176 = scmp.eq.s32.totalorder %s18, 0
    %p177 = por %p175, %p176
    %s178 = ssub.s32 %s19, %s31
    %s179 = ssub.s32 %s20, %s27
    %s180 = sor.u32 %s178, %s179
    %p181 = scmp.eq.s32.totalorder %s180, 0
    %s183 = sadd.s32 %s182, 1
    %s184 = scalar_select %p181, %s182, %s183
    %p187 = pneg %p181
    %p188 = scmp.eq.s32.totalorder %s12, 1
    %p189 = por %p187, %p188
    %p190 = scmp.ne.s32.totalorder %s182, %s185
    %p191 = scmp.eq.s32.totalorder %s12, 0
    %p192 = por %p190, %p191
    %p193 = scmp.ne.s32.totalorder %s182, %s185
    %p194 = scmp.eq.s32.totalorder %s17, 1
    %p195 = por %p193, %p194
    %p196 = scmp.ne.s32.totalorder %s185, %s186
    %p197 = scmp.eq.s32.totalorder %s17, 0
    %p198 = por %p196, %p197
    %p199 = scmp.ne.s32.totalorder %s185, %s186
    %p200 = scmp.eq.s32.totalorder %s18, 1
    %p201 = por %p199, %p200
    %p203 = scmp.ne.s32.totalorder %s186, %s202
    %p204 = scmp.eq.s32.totalorder %s18, 0
    %p205 = por %p203, %p204
    %p206 = scmp.le.s32.totalorder 1, %s12
    %p207 = scmp.lt.s32.totalorder %s12, 3
    %p208 = pnand %p206, %p207
    %p209 = pneg %p208
    // Predicated region
    $region9: #{basic_block_forward.2} parent=5 // pred_check
      _
    $region10: #{basic_block_forward.2} parent=5 // pred_check_branch
      %211 = sbr.rel (%p208) target = $region12
    $region11: #{basic_block_forward.2} parent=5 // pred_region
      %s212 = ssub.s32 %s12, 1
      // Predicated region
      $region13: #{basic_block_forward.2} parent=11 // pred_check
        %p213 = pneg %p149
      $region14: #{basic_block_forward.2} parent=11 // pred_check_branch
        %215 = sbr.rel (%p213) target = $region16
      $region15: #{basic_block_forward.2} parent=11 // pred_region
        _
      $region16: #{basic_block_forward.2} parent=11 // pred_fallthru
        _
      // Predicated region
      $region17: #{basic_block_forward.2} parent=11 // pred_check
        %p216 = pneg %p170
      $region18: #{basic_block_forward.2} parent=11 // pred_check_branch
        %218 = sbr.rel (%p216) target = $region20
      $region19: #{basic_block_forward.2} parent=11 // pred_region
        _
      $region20: #{basic_block_forward.2} parent=11 // pred_fallthru
        _
    $region12: #{basic_block_forward.2} parent=5 // pred_fallthru
      _
    %p219 = scmp.lt.s32.totalorder %s12, 2
    // Predicated region
    $region21: #{basic_block_forward.2} parent=5 // pred_check
      %p220 = pneg %p219
    $region22: #{basic_block_forward.2} parent=5 // pred_check_branch
      %222 = sbr.rel (%p220) target = $region24
    $region23: #{basic_block_forward.2} parent=5 // pred_region
      // Predicated region
      $region25: #{basic_block_forward.2} parent=23 // pred_check
        %p223 = pneg %p44
      $region26: #{basic_block_forward.2} parent=23 // pred_check_branch
        %225 = sbr.rel (%p223) target = $region28
      $region27: #{basic_block_forward.2} parent=23 // pred_region
        %p226 = scmp.lt.s32.totalorder %s19, 1
        %s227 = scalar_select %p226, %s19, 1
        %s228 = smul.addr %s227, 18
        %s229 = smul.addr %s228, 4
        %s230 = scalar_lea.vmem %s0, %s229
      $region28: #{basic_block_forward.2} parent=23 // pred_fallthru
        _
      // Predicated region
      $region29: #{basic_block_forward.2} parent=23 // pred_check
        %p231 = pneg %p70
      $region30: #{basic_block_forward.2} parent=23 // pred_check_branch
        %233 = sbr.rel (%p231) target = $region32
      $region31: #{basic_block_forward.2} parent=23 // pred_region
        %p234 = scmp.lt.s32.totalorder %s19, 1
        %s235 = scalar_select %p234, %s19, 1
        %s236 = smul.addr %s235, 18
        %s237 = smul.addr %s236, 4
        %s238 = scalar_lea.vmem %s1, %s237
      $region32: #{basic_block_forward.2} parent=23 // pred_fallthru
        _
      // Predicated region
      $region33: #{basic_block_forward.2} parent=23 // pred_check
        %p239 = pneg %p96
      $region34: #{basic_block_forward.2} parent=23 // pred_check_branch
        %241 = sbr.rel (%p239) target = $region36
      $region35: #{basic_block_forward.2} parent=23 // pred_region
        %p242 = scmp.lt.s32.totalorder %s19, 1
        %s243 = scalar_select %p242, %s19, 1
        %s244 = smul.addr %s243, 18
        %s245 = smul.addr %s244, 4
        %s246 = scalar_lea.vmem %s2, %s245
      $region36: #{basic_block_forward.2} parent=23 // pred_fallthru
        _
      // Predicated region
      $region37: #{basic_block_forward.2} parent=23 // pred_check
        %p247 = pneg %p122
      $region38: #{basic_block_forward.2} parent=23 // pred_check_branch
        %249 = sbr.rel (%p247) target = $region40
      $region39: #{basic_block_forward.2} parent=23 // pred_region
        %p250 = scmp.lt.s32.totalorder %s19, 1
        %s251 = scalar_select %p250, %s19, 1
        %s252 = smul.addr %s251, 18
        %s253 = smul.addr %s252, 4
        %s254 = scalar_lea.vmem %s3, %s253
      $region40: #{basic_block_forward.2} parent=23 // pred_fallthru
        _
    $region24: #{basic_block_forward.2} parent=5 // pred_fallthru
      _
    %p255 = scmp.le.s32.totalorder 1, %s12
    %p256 = scmp.lt.s32.totalorder %s12, 3
    %p257 = pnand %p255, %p256
    %p258 = pneg %p257
    // Predicated region
    $region41: #{basic_block_forward.2} parent=5 // pred_check
      _
    $region42: #{basic_block_forward.2} parent=5 // pred_check_branch
      %260 = sbr.rel (%p257) target = $region44
    $region43: #{basic_block_forward.2} parent=5 // pred_region
      %s261 = ssub.s32 %s12, 1
      %p262 = scmp.lt.s32.totalorder %s21, 1
      %s263 = scalar_select %p262, %s21, 1
      %s264 = smul.addr %s263, 18
      %s265 = smul.addr %s264, 4
      %s266 = scalar_lea.vmem %s0, %s265
      %p267 = pneg %p50
      %p268 = pneg %p47
      %p269 = scmp.lt.s32.totalorder %s21, 1
      %s270 = scalar_select %p269, %s21, 1
      %s271 = smul.addr %s270, 18
      %s272 = smul.addr %s271, 4
      %s273 = scalar_lea.vmem %s1, %s272
      %p274 = pneg %p76
      %p275 = pneg %p73
      %p276 = scmp.lt.s32.totalorder %s21, 1
      %s277 = scalar_select %p276, %s21, 1
      %s278 = smul.addr %s277, 18
      %s279 = smul.addr %s278, 4
      %s280 = scalar_lea.vmem %s2, %s279
      %p281 = pneg %p102
      %p282 = pneg %p99
      %p283 = scmp.lt.s32.totalorder %s21, 1
      %s284 = scalar_select %p283, %s21, 1
      %s285 = smul.addr %s284, 18
      %s286 = smul.addr %s285, 4
      %s287 = scalar_lea.vmem %s3, %s286
      %p288 = pneg %p128
      %p289 = pneg %p125
      %p290 = pneg %p149
      %p291 = pneg %p146
      %p292 = pneg %p170
      %p293 = pneg %p167
      %p294 = pneg %p198
      %p295 = pneg %p195
      %s296 = smul.u32 8, %s22
      %p297 = scmp.lt.s32.totalorder %s21, 1
      %s298 = scalar_select %p297, %s21, 1
      %p299 = scmp.lt.s32.totalorder %s296, 7
      %s300 = scalar_select %p299, %s296, 7
      %s301 = smul.addr %s298, 8
      %s302 = sadd.s32 %s300, %s301
      %s303 = smul.addr %s302, 4
      %s304 = scalar_lea.vmem %s6, %s303
      %p305 = scmp.lt.s32.totalorder %s21, 1
      %s306 = scalar_select %p305, %s21, 1
      %s307 = smul.addr %s306, 18
      %s308 = smul.addr %s307, 4
      %s309 = scalar_lea.vmem %s0, %s308
      %p310 = scmp.lt.s32.totalorder %s21, 1
      %s311 = scalar_select %p310, %s21, 1
      %s312 = smul.addr %s311, 18
      %s313 = smul.addr %s312, 4
      %s314 = scalar_lea.vmem %s1, %s313
      %p315 = scmp.lt.s32.totalorder %s21, 1
      %s316 = scalar_select %p315, %s21, 1
      %s317 = smul.addr %s316, 18
      %s318 = smul.addr %s317, 4
      %s319 = scalar_lea.vmem %s2, %s318
      %p320 = scmp.lt.s32.totalorder %s21, 1
      %s321 = scalar_select %p320, %s21, 1
      %s322 = smul.addr %s321, 18
      %s323 = smul.addr %s322, 4
      %s324 = scalar_lea.vmem %s3, %s323
      %s325 = smul.u32 8, %s22
      %p326 = scmp.lt.s32.totalorder %s21, 1
      %s327 = scalar_select %p326, %s21, 1
      %p328 = scmp.lt.s32.totalorder %s325, 7
      %s329 = scalar_select %p328, %s325, 7
      %s330 = smul.addr %s327, 8
      %s331 = sadd.s32 %s329, %s330
      %s332 = smul.addr %s331, 4
      %s333 = scalar_lea.vmem %s6, %s332
      %s334 = smul.u32 8, %s22
      %s336 = smul.u32 %s22, 8
      %s337 = smul.u32 %s336, 2
      %s338 = smul.addr %s337, 4
      %s339 = scalar_lea.vmem %s309, %s338
      %v340 = vld [vmem:[%s339] sm:$0xf]
      %v341 = vld [vmem:[%s339 + $0x8] sm:$0xf]
      %v342 = vld [vmem:[%s339 + $0x10] sm:$0xf]
      %v343 = vld [vmem:[%s339 + $0x18] sm:$0xf]
      %v344 = vld [vmem:[%s339 + $0x20] sm:$0xf]
      %v345 = vld [vmem:[%s339 + $0x28] sm:$0xf]
      %v346 = vld [vmem:[%s339 + $0x30] sm:$0xf]
      %v347 = vld [vmem:[%s339 + $0x38] sm:$0xf]
      %v348 = vunpack.c.l.bf16 %v340
      %v349 = vunpack.c.l.bf16 %v341
      %v350 = vunpack.c.l.bf16 %v342
      %v351 = vunpack.c.l.bf16 %v343
      %v352 = vunpack.c.l.bf16 %v344
      %v353 = vunpack.c.l.bf16 %v345
      %v354 = vunpack.c.l.bf16 %v346
      %v355 = vunpack.c.l.bf16 %v347
      %s356 = smul.addr %s337, 4
      %s357 = scalar_lea.vmem %s314, %s356
      %v358 = vld [vmem:[%s357] sm:$0xf]
      %v359 = vld [vmem:[%s357 + $0x8] sm:$0xf]
      %v360 = vld [vmem:[%s357 + $0x10] sm:$0xf]
      %v361 = vld [vmem:[%s357 + $0x18] sm:$0xf]
      %v362 = vld [vmem:[%s357 + $0x20] sm:$0xf]
      %v363 = vld [vmem:[%s357 + $0x28] sm:$0xf]
      %v364 = vld [vmem:[%s357 + $0x30] sm:$0xf]
      %v365 = vld [vmem:[%s357 + $0x38] sm:$0xf]
      %v366 = vunpack.c.l.bf16 %v358
      %v367 = vunpack.c.l.bf16 %v359
      %v368 = vunpack.c.l.bf16 %v360
      %v369 = vunpack.c.l.bf16 %v361
      %v370 = vunpack.c.l.bf16 %v362
      %v371 = vunpack.c.l.bf16 %v363
      %v372 = vunpack.c.l.bf16 %v364
      %v373 = vunpack.c.l.bf16 %v365
      %v374 = vld [vmem:[%s339 + $0x4] sm:$0x1]
      %v375 = vld [vmem:[%s339 + $0xc] sm:$0x1]
      %v376 = vld [vmem:[%s339 + $0x14] sm:$0x1]
      %v377 = vld [vmem:[%s339 + $0x1c] sm:$0x1]
      %v378 = vld [vmem:[%s339 + $0x24] sm:$0x1]
      %v379 = vld [vmem:[%s339 + $0x2c] sm:$0x1]
      %v380 = vld [vmem:[%s339 + $0x34] sm:$0x1]
      %v381 = vld [vmem:[%s339 + $0x3c] sm:$0x1]
      %vm382 = vsmask.f32 3328
      %vm383 = vsmask.f32 7440
      %vm384 = vmor %vm382, %vm383
      %v386 = vshrl.u32 %v340, 16
      %v388 = vrot.slane %v386, 4
      %v389 = vshll.u32 %v340, 16
      %v391 = vrot.slane %v389, 5
      %v392 = vor.u32 %v388, %v391
      %v393 = vrot.slane %v392, 4
      %v395 = vshll.u32 %v374, 16
      %v397 = vrot.slane %v395, 5
      %v398 = vsel %vm384, %v393, %v397
      %v400 = vshrl.u32 %v341, 16
      %v402 = vrot.slane %v400, 4
      %v403 = vshll.u32 %v341, 16
      %v405 = vrot.slane %v403, 5
      %v406 = vor.u32 %v402, %v405
      %v407 = vrot.slane %v406, 4
      %v409 = vshll.u32 %v375, 16
      %v411 = vrot.slane %v409, 5
      %v412 = vsel %vm384, %v407, %v411
      %v414 = vshrl.u32 %v342, 16
      %v416 = vrot.slane %v414, 4
      %v417 = vshll.u32 %v342, 16
      %v419 = vrot.slane %v417, 5
      %v420 = vor.u32 %v416, %v419
      %v421 = vrot.slane %v420, 4
      %v423 = vshll.u32 %v376, 16
      %v425 = vrot.slane %v423, 5
      %v426 = vsel %vm384, %v421, %v425
      %v428 = vshrl.u32 %v343, 16
      %v430 = vrot.slane %v428, 4
      %v431 = vshll.u32 %v343, 16
      %v433 = vrot.slane %v431, 5
      %v434 = vor.u32 %v430, %v433
      %v435 = vrot.slane %v434, 4
      %v437 = vshll.u32 %v377, 16
      %v439 = vrot.slane %v437, 5
      %v440 = vsel %vm384, %v435, %v439
      %v442 = vshrl.u32 %v344, 16
      %v444 = vrot.slane %v442, 4
      %v445 = vshll.u32 %v344, 16
      %v447 = vrot.slane %v445, 5
      %v448 = vor.u32 %v444, %v447
      %v449 = vrot.slane %v448, 4
      %v451 = vshll.u32 %v378, 16
      %v453 = vrot.slane %v451, 5
      %v454 = vsel %vm384, %v449, %v453
      %v456 = vshrl.u32 %v345, 16
      %v458 = vrot.slane %v456, 4
      %v459 = vshll.u32 %v345, 16
      %v461 = vrot.slane %v459, 5
      %v462 = vor.u32 %v458, %v461
      %v463 = vrot.slane %v462, 4
      %v465 = vshll.u32 %v379, 16
      %v467 = vrot.slane %v465, 5
      %v468 = vsel %vm384, %v463, %v467
      %v470 = vshrl.u32 %v346, 16
      %v472 = vrot.slane %v470, 4
      %v473 = vshll.u32 %v346, 16
      %v475 = vrot.slane %v473, 5
      %v476 = vor.u32 %v472, %v475
      %v477 = vrot.slane %v476, 4
      %v479 = vshll.u32 %v380, 16
      %v481 = vrot.slane %v479, 5
      %v482 = vsel %vm384, %v477, %v481
      %v484 = vshrl.u32 %v347, 16
      %v486 = vrot.slane %v484, 4
      %v487 = vshll.u32 %v347, 16
      %v489 = vrot.slane %v487, 5
      %v490 = vor.u32 %v486, %v489
      %v491 = vrot.slane %v490, 4
      %v493 = vshll.u32 %v381, 16
      %v495 = vrot.slane %v493, 5
      %v496 = vsel %vm384, %v491, %v495
      %v505 = vunpack.c.l.bf16 %v398
      %v506 = vunpack.c.l.bf16 %v412
      %v507 = vunpack.c.l.bf16 %v426
      %v508 = vunpack.c.l.bf16 %v440
      %v509 = vunpack.c.l.bf16 %v454
      %v510 = vunpack.c.l.bf16 %v468
      %v511 = vunpack.c.l.bf16 %v482
      %v512 = vunpack.c.l.bf16 %v496
      %s513 = smul.addr %s337, 4
      %s514 = scalar_lea.vmem %s319, %s513
      %v515 = vld [vmem:[%s514] sm:$0xf]
      %v516 = vld [vmem:[%s514 + $0x8] sm:$0xf]
      %v517 = vld [vmem:[%s514 + $0x10] sm:$0xf]
      %v518 = vld [vmem:[%s514 + $0x18] sm:$0xf]
      %v519 = vld [vmem:[%s514 + $0x20] sm:$0xf]
      %v520 = vld [vmem:[%s514 + $0x28] sm:$0xf]
      %v521 = vld [vmem:[%s514 + $0x30] sm:$0xf]
      %v522 = vld [vmem:[%s514 + $0x38] sm:$0xf]
      %v523 = vunpack.c.l.bf16 %v515
      %v524 = vunpack.c.l.bf16 %v516
      %v525 = vunpack.c.l.bf16 %v517
      %v526 = vunpack.c.l.bf16 %v518
      %v527 = vunpack.c.l.bf16 %v519
      %v528 = vunpack.c.l.bf16 %v520
      %v529 = vunpack.c.l.bf16 %v521
      %v530 = vunpack.c.l.bf16 %v522
      %s531 = smul.addr %s337, 4
      %s532 = scalar_lea.vmem %s324, %s531
      %v533 = vld [vmem:[%s532] sm:$0xf]
      %v534 = vld [vmem:[%s532 + $0x8] sm:$0xf]
      %v535 = vld [vmem:[%s532 + $0x10] sm:$0xf]
      %v536 = vld [vmem:[%s532 + $0x18] sm:$0xf]
      %v537 = vld [vmem:[%s532 + $0x20] sm:$0xf]
      %v538 = vld [vmem:[%s532 + $0x28] sm:$0xf]
      %v539 = vld [vmem:[%s532 + $0x30] sm:$0xf]
      %v540 = vld [vmem:[%s532 + $0x38] sm:$0xf]
      %v541 = vunpack.c.l.bf16 %v533
      %v542 = vunpack.c.l.bf16 %v534
      %v543 = vunpack.c.l.bf16 %v535
      %v544 = vunpack.c.l.bf16 %v536
      %v545 = vunpack.c.l.bf16 %v537
      %v546 = vunpack.c.l.bf16 %v538
      %v547 = vunpack.c.l.bf16 %v539
      %v548 = vunpack.c.l.bf16 %v540
      %v549 = vld [vmem:[%s514 + $0x4] sm:$0x1]
      %v550 = vld [vmem:[%s514 + $0xc] sm:$0x1]
      %v551 = vld [vmem:[%s514 + $0x14] sm:$0x1]
      %v552 = vld [vmem:[%s514 + $0x1c] sm:$0x1]
      %v553 = vld [vmem:[%s514 + $0x24] sm:$0x1]
      %v554 = vld [vmem:[%s514 + $0x2c] sm:$0x1]
      %v555 = vld [vmem:[%s514 + $0x34] sm:$0x1]
      %v556 = vld [vmem:[%s514 + $0x3c] sm:$0x1]
      %v558 = vshrl.u32 %v515, 16
      %v560 = vrot.slane %v558, 4
      %v561 = vshll.u32 %v515, 16
      %v563 = vrot.slane %v561, 5
      %v564 = vor.u32 %v560, %v563
      %v565 = vrot.slane %v564, 4
      %v567 = vshll.u32 %v549, 16
      %v569 = vrot.slane %v567, 5
      %v570 = vsel %vm384, %v565, %v569
      %v572 = vshrl.u32 %v516, 16
      %v574 = vrot.slane %v572, 4
      %v575 = vshll.u32 %v516, 16
      %v577 = vrot.slane %v575, 5
      %v578 = vor.u32 %v574, %v577
      %v579 = vrot.slane %v578, 4
      %v581 = vshll.u32 %v550, 16
      %v583 = vrot.slane %v581, 5
      %v584 = vsel %vm384, %v579, %v583
      %v586 = vshrl.u32 %v517, 16
      %v588 = vrot.slane %v586, 4
      %v589 = vshll.u32 %v517, 16
      %v591 = vrot.slane %v589, 5
      %v592 = vor.u32 %v588, %v591
      %v593 = vrot.slane %v592, 4
      %v595 = vshll.u32 %v551, 16
      %v597 = vrot.slane %v595, 5
      %v598 = vsel %vm384, %v593, %v597
      %v600 = vshrl.u32 %v518, 16
      %v602 = vrot.slane %v600, 4
      %v603 = vshll.u32 %v518, 16
      %v605 = vrot.slane %v603, 5
      %v606 = vor.u32 %v602, %v605
      %v607 = vrot.slane %v606, 4
      %v609 = vshll.u32 %v552, 16
      %v611 = vrot.slane %v609, 5
      %v612 = vsel %vm384, %v607, %v611
      %v614 = vshrl.u32 %v519, 16
      %v616 = vrot.slane %v614, 4
      %v617 = vshll.u32 %v519, 16
      %v619 = vrot.slane %v617, 5
      %v620 = vor.u32 %v616, %v619
      %v621 = vrot.slane %v620, 4
      %v623 = vshll.u32 %v553, 16
      %v625 = vrot.slane %v623, 5
      %v626 = vsel %vm384, %v621, %v625
      %v628 = vshrl.u32 %v520, 16
      %v630 = vrot.slane %v628, 4
      %v631 = vshll.u32 %v520, 16
      %v633 = vrot.slane %v631, 5
      %v634 = vor.u32 %v630, %v633
      %v635 = vrot.slane %v634, 4
      %v637 = vshll.u32 %v554, 16
      %v639 = vrot.slane %v637, 5
      %v640 = vsel %vm384, %v635, %v639
      %v642 = vshrl.u32 %v521, 16
      %v644 = vrot.slane %v642, 4
      %v645 = vshll.u32 %v521, 16
      %v647 = vrot.slane %v645, 5
      %v648 = vor.u32 %v644, %v647
      %v649 = vrot.slane %v648, 4
      %v651 = vshll.u32 %v555, 16
      %v653 = vrot.slane %v651, 5
      %v654 = vsel %vm384, %v649, %v653
      %v656 = vshrl.u32 %v522, 16
      %v658 = vrot.slane %v656, 4
      %v659 = vshll.u32 %v522, 16
      %v661 = vrot.slane %v659, 5
      %v662 = vor.u32 %v658, %v661
      %v663 = vrot.slane %v662, 4
      %v665 = vshll.u32 %v556, 16
      %v667 = vrot.slane %v665, 5
      %v668 = vsel %vm384, %v663, %v667
      %v677 = vunpack.c.l.bf16 %v570
      %v678 = vunpack.c.l.bf16 %v584
      %v679 = vunpack.c.l.bf16 %v598
      %v680 = vunpack.c.l.bf16 %v612
      %v681 = vunpack.c.l.bf16 %v626
      %v682 = vunpack.c.l.bf16 %v640
      %v683 = vunpack.c.l.bf16 %v654
      %v684 = vunpack.c.l.bf16 %v668
      %s685 = sadd.s32 %s336, 1
      %s686 = smul.u32 %s685, 2
      %s687 = smul.addr %s686, 4
      %s688 = scalar_lea.vmem %s309, %s687
      %v689 = vld [vmem:[%s688] sm:$0xf]
      %v690 = vld [vmem:[%s688 + $0x8] sm:$0xf]
      %v691 = vld [vmem:[%s688 + $0x10] sm:$0xf]
      %v692 = vld [vmem:[%s688 + $0x18] sm:$0xf]
      %v693 = vld [vmem:[%s688 + $0x20] sm:$0xf]
      %v694 = vld [vmem:[%s688 + $0x28] sm:$0xf]
      %v695 = vld [vmem:[%s688 + $0x30] sm:$0xf]
      %v696 = vld [vmem:[%s688 + $0x38] sm:$0xf]
      %v697 = vunpack.c.l.bf16 %v689
      %v698 = vunpack.c.l.bf16 %v690
      %v699 = vunpack.c.l.bf16 %v691
      %v700 = vunpack.c.l.bf16 %v692
      %v701 = vunpack.c.l.bf16 %v693
      %v702 = vunpack.c.l.bf16 %v694
      %v703 = vunpack.c.l.bf16 %v695
      %v704 = vunpack.c.l.bf16 %v696
      %s705 = smul.addr %s686, 4
      %s706 = scalar_lea.vmem %s314, %s705
      %v707 = vld [vmem:[%s706] sm:$0xf]
      %v708 = vld [vmem:[%s706 + $0x8] sm:$0xf]
      %v709 = vld [vmem:[%s706 + $0x10] sm:$0xf]
      %v710 = vld [vmem:[%s706 + $0x18] sm:$0xf]
      %v711 = vld [vmem:[%s706 + $0x20] sm:$0xf]
      %v712 = vld [vmem:[%s706 + $0x28] sm:$0xf]
      %v713 = vld [vmem:[%s706 + $0x30] sm:$0xf]
      %v714 = vld [vmem:[%s706 + $0x38] sm:$0xf]
      %v715 = vunpack.c.l.bf16 %v707
      %v716 = vunpack.c.l.bf16 %v708
      %v717 = vunpack.c.l.bf16 %v709
      %v718 = vunpack.c.l.bf16 %v710
      %v719 = vunpack.c.l.bf16 %v711
      %v720 = vunpack.c.l.bf16 %v712
      %v721 = vunpack.c.l.bf16 %v713
      %v722 = vunpack.c.l.bf16 %v714
      %v723 = vld [vmem:[%s688 + $0x4] sm:$0x1]
      %v724 = vld [vmem:[%s688 + $0xc] sm:$0x1]
      %v725 = vld [vmem:[%s688 + $0x14] sm:$0x1]
      %v726 = vld [vmem:[%s688 + $0x1c] sm:$0x1]
      %v727 = vld [vmem:[%s688 + $0x24] sm:$0x1]
      %v728 = vld [vmem:[%s688 + $0x2c] sm:$0x1]
      %v729 = vld [vmem:[%s688 + $0x34] sm:$0x1]
      %v730 = vld [vmem:[%s688 + $0x3c] sm:$0x1]
      %v732 = vshrl.u32 %v689, 16
      %v734 = vrot.slane %v732, 4
      %v735 = vshll.u32 %v689, 16
      %v737 = vrot.slane %v735, 5
      %v738 = vor.u32 %v734, %v737
      %v739 = vrot.slane %v738, 4
      %v741 = vshll.u32 %v723, 16
      %v743 = vrot.slane %v741, 5
      %v744 = vsel %vm384, %v739, %v743
      %v746 = vshrl.u32 %v690, 16
      %v748 = vrot.slane %v746, 4
      %v749 = vshll.u32 %v690, 16
      %v751 = vrot.slane %v749, 5
      %v752 = vor.u32 %v748, %v751
      %v753 = vrot.slane %v752, 4
      %v755 = vshll.u32 %v724, 16
      %v757 = vrot.slane %v755, 5
      %v758 = vsel %vm384, %v753, %v757
      %v760 = vshrl.u32 %v691, 16
      %v762 = vrot.slane %v760, 4
      %v763 = vshll.u32 %v691, 16
      %v765 = vrot.slane %v763, 5
      %v766 = vor.u32 %v762, %v765
      %v767 = vrot.slane %v766, 4
      %v769 = vshll.u32 %v725, 16
      %v771 = vrot.slane %v769, 5
      %v772 = vsel %vm384, %v767, %v771
      %v774 = vshrl.u32 %v692, 16
      %v776 = vrot.slane %v774, 4
      %v777 = vshll.u32 %v692, 16
      %v779 = vrot.slane %v777, 5
      %v780 = vor.u32 %v776, %v779
      %v781 = vrot.slane %v780, 4
      %v783 = vshll.u32 %v726, 16
      %v785 = vrot.slane %v783, 5
      %v786 = vsel %vm384, %v781, %v785
      %v788 = vshrl.u32 %v693, 16
      %v790 = vrot.slane %v788, 4
      %v791 = vshll.u32 %v693, 16
      %v793 = vrot.slane %v791, 5
      %v794 = vor.u32 %v790, %v793
      %v795 = vrot.slane %v794, 4
      %v797 = vshll.u32 %v727, 16
      %v799 = vrot.slane %v797, 5
      %v800 = vsel %vm384, %v795, %v799
      %v802 = vshrl.u32 %v694, 16
      %v804 = vrot.slane %v802, 4
      %v805 = vshll.u32 %v694, 16
      %v807 = vrot.slane %v805, 5
      %v808 = vor.u32 %v804, %v807
      %v809 = vrot.slane %v808, 4
      %v811 = vshll.u32 %v728, 16
      %v813 = vrot.slane %v811, 5
      %v814 = vsel %vm384, %v809, %v813
      %v816 = vshrl.u32 %v695, 16
      %v818 = vrot.slane %v816, 4
      %v819 = vshll.u32 %v695, 16
      %v821 = vrot.slane %v819, 5
      %v822 = vor.u32 %v818, %v821
      %v823 = vrot.slane %v822, 4
      %v825 = vshll.u32 %v729, 16
      %v827 = vrot.slane %v825, 5
      %v828 = vsel %vm384, %v823, %v827
      %v830 = vshrl.u32 %v696, 16
      %v832 = vrot.slane %v830, 4
      %v833 = vshll.u32 %v696, 16
      %v835 = vrot.slane %v833, 5
      %v836 = vor.u32 %v832, %v835
      %v837 = vrot.slane %v836, 4
      %v839 = vshll.u32 %v730, 16
      %v841 = vrot.slane %v839, 5
      %v842 = vsel %vm384, %v837, %v841
      %v851 = vunpack.c.l.bf16 %v744
      %v852 = vunpack.c.l.bf16 %v758
      %v853 = vunpack.c.l.bf16 %v772
      %v854 = vunpack.c.l.bf16 %v786
      %v855 = vunpack.c.l.bf16 %v800
      %v856 = vunpack.c.l.bf16 %v814
      %v857 = vunpack.c.l.bf16 %v828
      %v858 = vunpack.c.l.bf16 %v842
      %867 = vrot.lane.b32.xlu0 %v366, 4
      %v868 = vpop.permute.xlu0 %867
      %869 = vrot.lane.b32.xlu0 %v367, 4
      %v870 = vpop.permute.xlu0 %869
      %871 = vrot.lane.b32.xlu0 %v368, 4
      %v872 = vpop.permute.xlu0 %871
      %873 = vrot.lane.b32.xlu0 %v369, 4
      %v874 = vpop.permute.xlu0 %873
      %875 = vrot.lane.b32.xlu0 %v370, 4
      %v876 = vpop.permute.xlu0 %875
      %877 = vrot.lane.b32.xlu0 %v371, 4
      %v878 = vpop.permute.xlu0 %877
      %879 = vrot.lane.b32.xlu0 %v372, 4
      %v880 = vpop.permute.xlu0 %879
      %881 = vrot.lane.b32.xlu0 %v373, 4
      %v882 = vpop.permute.xlu0 %881
      %899 = vrot.lane.b32.xlu0 %v505, 8
      %v900 = vpop.permute.xlu0 %899
      %901 = vrot.lane.b32.xlu0 %v506, 8
      %v902 = vpop.permute.xlu0 %901
      %903 = vrot.lane.b32.xlu0 %v507, 8
      %v904 = vpop.permute.xlu0 %903
      %905 = vrot.lane.b32.xlu0 %v508, 8
      %v906 = vpop.permute.xlu0 %905
      %907 = vrot.lane.b32.xlu0 %v509, 8
      %v908 = vpop.permute.xlu0 %907
      %909 = vrot.lane.b32.xlu0 %v510, 8
      %v910 = vpop.permute.xlu0 %909
      %911 = vrot.lane.b32.xlu0 %v511, 8
      %v912 = vpop.permute.xlu0 %911
      %913 = vrot.lane.b32.xlu0 %v512, 8
      %v914 = vpop.permute.xlu0 %913
      %931 = vrot.lane.b32.xlu0 %v523, 12
      %v932 = vpop.permute.xlu0 %931
      %933 = vrot.lane.b32.xlu0 %v524, 12
      %v934 = vpop.permute.xlu0 %933
      %935 = vrot.lane.b32.xlu0 %v525, 12
      %v936 = vpop.permute.xlu0 %935
      %937 = vrot.lane.b32.xlu0 %v526, 12
      %v938 = vpop.permute.xlu0 %937
      %939 = vrot.lane.b32.xlu0 %v527, 12
      %v940 = vpop.permute.xlu0 %939
      %941 = vrot.lane.b32.xlu0 %v528, 12
      %v942 = vpop.permute.xlu0 %941
      %943 = vrot.lane.b32.xlu0 %v529, 12
      %v944 = vpop.permute.xlu0 %943
      %945 = vrot.lane.b32.xlu0 %v530, 12
      %v946 = vpop.permute.xlu0 %945
      %963 = vrot.lane.b32.xlu0 %v541, 16
      %v964 = vpop.permute.xlu0 %963
      %965 = vrot.lane.b32.xlu0 %v542, 16
      %v966 = vpop.permute.xlu0 %965
      %967 = vrot.lane.b32.xlu0 %v543, 16
      %v968 = vpop.permute.xlu0 %967
      %969 = vrot.lane.b32.xlu0 %v544, 16
      %v970 = vpop.permute.xlu0 %969
      %971 = vrot.lane.b32.xlu0 %v545, 16
      %v972 = vpop.permute.xlu0 %971
      %973 = vrot.lane.b32.xlu0 %v546, 16
      %v974 = vpop.permute.xlu0 %973
      %975 = vrot.lane.b32.xlu0 %v547, 16
      %v976 = vpop.permute.xlu0 %975
      %977 = vrot.lane.b32.xlu0 %v548, 16
      %v978 = vpop.permute.xlu0 %977
      %995 = vrot.lane.b32.xlu0 %v677, 20
      %v996 = vpop.permute.xlu0 %995
      %997 = vrot.lane.b32.xlu0 %v678, 20
      %v998 = vpop.permute.xlu0 %997
      %999 = vrot.lane.b32.xlu0 %v679, 20
      %v1000 = vpop.permute.xlu0 %999
      %1001 = vrot.lane.b32.xlu0 %v680, 20
      %v1002 = vpop.permute.xlu0 %1001
      %1003 = vrot.lane.b32.xlu0 %v681, 20
      %v1004 = vpop.permute.xlu0 %1003
      %1005 = vrot.lane.b32.xlu0 %v682, 20
      %v1006 = vpop.permute.xlu0 %1005
      %1007 = vrot.lane.b32.xlu0 %v683, 20
      %v1008 = vpop.permute.xlu0 %1007
      %1009 = vrot.lane.b32.xlu0 %v684, 20
      %v1010 = vpop.permute.xlu0 %1009
      %1027 = vrot.lane.b32.xlu0 %v697, 24
      %v1028 = vpop.permute.xlu0 %1027
      %1029 = vrot.lane.b32.xlu0 %v698, 24
      %v1030 = vpop.permute.xlu0 %1029
      %1031 = vrot.lane.b32.xlu0 %v699, 24
      %v1032 = vpop.permute.xlu0 %1031
      %1033 = vrot.lane.b32.xlu0 %v700, 24
      %v1034 = vpop.permute.xlu0 %1033
      %1035 = vrot.lane.b32.xlu0 %v701, 24
      %v1036 = vpop.permute.xlu0 %1035
      %1037 = vrot.lane.b32.xlu0 %v702, 24
      %v1038 = vpop.permute.xlu0 %1037
      %1039 = vrot.lane.b32.xlu0 %v703, 24
      %v1040 = vpop.permute.xlu0 %1039
      %1041 = vrot.lane.b32.xlu0 %v704, 24
      %v1042 = vpop.permute.xlu0 %1041
      %1059 = vrot.lane.b32.xlu0 %v715, 28
      %v1060 = vpop.permute.xlu0 %1059
      %1061 = vrot.lane.b32.xlu0 %v716, 28
      %v1062 = vpop.permute.xlu0 %1061
      %1063 = vrot.lane.b32.xlu0 %v717, 28
      %v1064 = vpop.permute.xlu0 %1063
      %1065 = vrot.lane.b32.xlu0 %v718, 28
      %v1066 = vpop.permute.xlu0 %1065
      %1067 = vrot.lane.b32.xlu0 %v719, 28
      %v1068 = vpop.permute.xlu0 %1067
      %1069 = vrot.lane.b32.xlu0 %v720, 28
      %v1070 = vpop.permute.xlu0 %1069
      %1071 = vrot.lane.b32.xlu0 %v721, 28
      %v1072 = vpop.permute.xlu0 %1071
      %1073 = vrot.lane.b32.xlu0 %v722, 28
      %v1074 = vpop.permute.xlu0 %1073
      %1091 = vrot.lane.b32.xlu0 %v851, 32
      %v1092 = vpop.permute.xlu0 %1091
      %1093 = vrot.lane.b32.xlu0 %v852, 32
      %v1094 = vpop.permute.xlu0 %1093
      %1095 = vrot.lane.b32.xlu0 %v853, 32
      %v1096 = vpop.permute.xlu0 %1095
      %1097 = vrot.lane.b32.xlu0 %v854, 32
      %v1098 = vpop.permute.xlu0 %1097
      %1099 = vrot.lane.b32.xlu0 %v855, 32
      %v1100 = vpop.permute.xlu0 %1099
      %1101 = vrot.lane.b32.xlu0 %v856, 32
      %v1102 = vpop.permute.xlu0 %1101
      %1103 = vrot.lane.b32.xlu0 %v857, 32
      %v1104 = vpop.permute.xlu0 %1103
      %1105 = vrot.lane.b32.xlu0 %v858, 32
      %v1106 = vpop.permute.xlu0 %1105
      %vm1115 = vcmask 31744
      %v1116 = vsel %vm1115, %v348, %v868
      %v1117 = vsel %vm1115, %v349, %v870
      %v1118 = vsel %vm1115, %v350, %v872
      %v1119 = vsel %vm1115, %v351, %v874
      %v1120 = vsel %vm1115, %v352, %v876
      %v1121 = vsel %vm1115, %v353, %v878
      %v1122 = vsel %vm1115, %v354, %v880
      %v1123 = vsel %vm1115, %v355, %v882
      %vm1124 = vcmask 64512
      %v1125 = vsel %vm1124, %v1116, %v900
      %v1126 = vsel %vm1124, %v1117, %v902
      %v1127 = vsel %vm1124, %v1118, %v904
      %v1128 = vsel %vm1124, %v1119, %v906
      %v1129 = vsel %vm1124, %v1120, %v908
      %v1130 = vsel %vm1124, %v1121, %v910
      %v1131 = vsel %vm1124, %v1122, %v912
      %v1132 = vsel %vm1124, %v1123, %v914
      %vm1133 = vcmask 97280
      %v1134 = vsel %vm1133, %v1125, %v932
      %v1135 = vsel %vm1133, %v1126, %v934
      %v1136 = vsel %vm1133, %v1127, %v936
      %v1137 = vsel %vm1133, %v1128, %v938
      %v1138 = vsel %vm1133, %v1129, %v940
      %v1139 = vsel %vm1133, %v1130, %v942
      %v1140 = vsel %vm1133, %v1131, %v944
      %v1141 = vsel %vm1133, %v1132, %v946
      %vm1142 = vcmask 130048
      %v1143 = vsel %vm1142, %v1134, %v964
      %v1144 = vsel %vm1142, %v1135, %v966
      %v1145 = vsel %vm1142, %v1136, %v968
      %v1146 = vsel %vm1142, %v1137, %v970
      %v1147 = vsel %vm1142, %v1138, %v972
      %v1148 = vsel %vm1142, %v1139, %v974
      %v1149 = vsel %vm1142, %v1140, %v976
      %v1150 = vsel %vm1142, %v1141, %v978
      %vm1151 = vcmask 162816
      %v1152 = vsel %vm1151, %v1143, %v996
      %v1153 = vsel %vm1151, %v1144, %v998
      %v1154 = vsel %vm1151, %v1145, %v1000
      %v1155 = vsel %vm1151, %v1146, %v1002
      %v1156 = vsel %vm1151, %v1147, %v1004
      %v1157 = vsel %vm1151, %v1148, %v1006
      %v1158 = vsel %vm1151, %v1149, %v1008
      %v1159 = vsel %vm1151, %v1150, %v1010
      %vm1160 = vcmask 195584
      %v1161 = vsel %vm1160, %v1152, %v1028
      %v1162 = vsel %vm1160, %v1153, %v1030
      %v1163 = vsel %vm1160, %v1154, %v1032
      %v1164 = vsel %vm1160, %v1155, %v1034
      %v1165 = vsel %vm1160, %v1156, %v1036
      %v1166 = vsel %vm1160, %v1157, %v1038
      %v1167 = vsel %vm1160, %v1158, %v1040
      %v1168 = vsel %vm1160, %v1159, %v1042
      %vm1169 = vcmask 228352
      %v1170 = vsel %vm1169, %v1161, %v1060
      %v1171 = vsel %vm1169, %v1162, %v1062
      %v1172 = vsel %vm1169, %v1163, %v1064
      %v1173 = vsel %vm1169, %v1164, %v1066
      %v1174 = vsel %vm1169, %v1165, %v1068
      %v1175 = vsel %vm1169, %v1166, %v1070
      %v1176 = vsel %vm1169, %v1167, %v1072
      %v1177 = vsel %vm1169, %v1168, %v1074
      %vm1178 = vcmask 261120
      %v1179 = vsel %vm1178, %v1170, %v1092
      %v1180 = vsel %vm1178, %v1171, %v1094
      %v1181 = vsel %vm1178, %v1172, %v1096
      %v1182 = vsel %vm1178, %v1173, %v1098
      %v1183 = vsel %vm1178, %v1174, %v1100
      %v1184 = vsel %vm1178, %v1175, %v1102
      %v1185 = vsel %vm1178, %v1176, %v1104
      %v1186 = vsel %vm1178, %v1177, %v1106
      %v1187 = vpack.c.bf16 %v1180, %v1179
      %v1188 = vpack.c.bf16 %v1182, %v1181
      %v1189 = vpack.c.bf16 %v1184, %v1183
      %v1190 = vpack.c.bf16 %v1186, %v1185
      %v1191 = vld [vmem:[%s4] sm:$0xf]
      %v1192 = vld [vmem:[%s4 + $0x4] sm:$0xf]
      %v1193 = vld [vmem:[%s4 + $0x8] sm:$0xf]
      %v1194 = vld [vmem:[%s4 + $0xc] sm:$0xf]
      %v1195 = vld [vmem:[%s4 + $0x10] sm:$0x3]
      %v1196 = vld [vmem:[%s5] sm:$0x1]
      %v1198 = vperm.slane %v1196, 0
      %v1205 = vunpack.c.l.b16 %v1191
      %v1206 = vunpack.c.l.b16 %v1192
      %v1207 = vunpack.c.l.b16 %v1193
      %v1208 = vunpack.c.l.b16 %v1194
      %v1209 = vunpack.c.l.b16 %v1195
      %v1210 = vpack.c.b16 %v1206, %v1205
      %v1211 = vpack.c.b16 %v1208, %v1207
      %v1212 = vpack.c.b16 %v1209, %v1209
      %vm1215 = vcmask 293888
      %v1217 = vsel %vm1215, %v1187, 0
      %v1220 = vsel %vm1215, %v1188, 0
      %v1223 = vsel %vm1215, %v1189, 0
      %v1226 = vsel %vm1215, %v1190, 0
      %vm1228 = vcmask 1041408
      %v1230 = vsel %vm1228, %v1212, 0
      %1232 = vmatpush.bf16.msra.mxu0 0
      %1233 = vmatpush.bf16.msra.mxu0 0
      %1234 = vmatpush.bf16.msra.mxu0 0
      %1235 = vmatpush.bf16.msra.mxu0 0
      %1236 = vmatpush.bf16.msra.mxu0 0
      %1237 = vmatpush.bf16.msra.mxu0 %v1230
      %1238 = vmatpush.bf16.msra.mxu0 %v1211
      %1239 = vmatpush.bf16.msra.mxu0 %v1210
      %1240 = vmatmul.bf16.gmra.mxu0 %v1217
      %v1241 = vpop.f32.mrf.mxu0
      %v1242 = vadd.f32 %v1198, %v1241
      %v1243 = vpop.f32.mrf.mxu0
      %v1244 = vadd.f32 %v1198, %v1243
      %1245 = vmatmul.bf16.gmra.mxu0 %v1220
      %v1246 = vpop.f32.mrf.mxu0
      %v1247 = vadd.f32 %v1198, %v1246
      %v1248 = vpop.f32.mrf.mxu0
      %v1249 = vadd.f32 %v1198, %v1248
      %1250 = vmatmul.bf16.gmra.mxu0 %v1223
      %v1251 = vpop.f32.mrf.mxu0
      %v1252 = vadd.f32 %v1198, %v1251
      %v1253 = vpop.f32.mrf.mxu0
      %v1254 = vadd.f32 %v1198, %v1253
      %1255 = vmatmul.bf16.gmra.mxu0 %v1226
      %v1256 = vpop.f32.mrf.mxu0
      %v1257 = vadd.f32 %v1198, %v1256
      %v1258 = vpop.f32.mrf.mxu0
      %v1259 = vadd.f32 %v1198, %v1258
      %1260 = vdwg.mxu0
      %v1261 = vmax.f32 %v1242, 0.0
      %v1262 = vmax.f32 %v1244, 0.0
      %v1263 = vmax.f32 %v1247, 0.0
      %v1264 = vmax.f32 %v1249, 0.0
      %v1265 = vmax.f32 %v1252, 0.0
      %v1266 = vmax.f32 %v1254, 0.0
      %v1267 = vmax.f32 %v1257, 0.0
      %v1268 = vmax.f32 %v1259, 0.0
      %v1269 = vpack.c.bf16 %v1261, %v1261
      %v1270 = vpack.c.bf16 %v1262, %v1262
      %v1271 = vpack.c.bf16 %v1263, %v1263
      %v1272 = vpack.c.bf16 %v1264, %v1264
      %v1273 = vpack.c.bf16 %v1265, %v1265
      %v1274 = vpack.c.bf16 %v1266, %v1266
      %v1275 = vpack.c.bf16 %v1267, %v1267
      %v1276 = vpack.c.bf16 %v1268, %v1268
      %vm1277 = vcmask 60416
      %1278 = vst.msk [vmem:[%s333] sm:$0xf] %vm1277, %v1269
      %1279 = vst.msk [vmem:[%s333 + $0x4] sm:$0xf] %vm1277, %v1270
      %1280 = vst.msk [vmem:[%s333 + $0x8] sm:$0xf] %vm1277, %v1271
      %1281 = vst.msk [vmem:[%s333 + $0xc] sm:$0xf] %vm1277, %v1272
      %1282 = vst.msk [vmem:[%s333 + $0x10] sm:$0xf] %vm1277, %v1273
      %1283 = vst.msk [vmem:[%s333 + $0x14] sm:$0xf] %vm1277, %v1274
      %1284 = vst.msk [vmem:[%s333 + $0x18] sm:$0xf] %vm1277, %v1275
      %1285 = vst.msk [vmem:[%s333 + $0x1c] sm:$0xf] %vm1277, %v1276
      %s1286 = smul.u32 8, %s22
      %p1287 = scmp.lt.s32.totalorder %s21, 1
      %s1288 = scalar_select %p1287, %s21, 1
      %p1289 = scmp.lt.s32.totalorder %s1286, 7
      %s1290 = scalar_select %p1289, %s1286, 7
      %s1291 = smul.addr %s1288, 8
      %s1292 = sadd.s32 %s1290, %s1291
      %s1293 = smul.addr %s1292, 4
      %s1294 = scalar_lea.vmem %s6, %s1293
      // Predicated region
      $region45: #{basic_block_forward.2} parent=43 // pred_check
        %p1295 = pneg %p195
      $region46: #{basic_block_forward.2} parent=43 // pred_check_branch
        %1297 = sbr.rel (%p1295) target = $region48
      $region47: #{basic_block_forward.2} parent=43 // pred_region
        %s1298 = smul.u32 8, %s22
      $region48: #{basic_block_forward.2} parent=43 // pred_fallthru
        _
    $region44: #{basic_block_forward.2} parent=5 // pred_fallthru
      _
    %p1299 = scmp.le.s32.totalorder 2, %s12
    // Predicated region
    $region49: #{basic_block_forward.2} parent=5 // pred_check
      %p1300 = pneg %p1299
    $region50: #{basic_block_forward.2} parent=5 // pred_check_branch
      %1302 = sbr.rel (%p1300) target = $region52
    $region51: #{basic_block_forward.2} parent=5 // pred_region
      %s1303 = ssub.s32 %s12, 2
      // Predicated region
      $region53: #{basic_block_forward.2} parent=51 // pred_check
        %p1304 = pneg %p201
      $region54: #{basic_block_forward.2} parent=51 // pred_check_branch
        %1306 = sbr.rel (%p1304) target = $region56
      $region55: #{basic_block_forward.2} parent=51 // pred_region
        %s1307 = smul.u32 8, %s24
        %p1308 = scmp.lt.s32.totalorder %s23, 1
        %s1309 = scalar_select %p1308, %s23, 1
        %p1310 = scmp.lt.s32.totalorder %s1307, 7
        %s1311 = scalar_select %p1310, %s1307, 7
        %s1312 = smul.addr %s1309, 8
        %s1313 = sadd.s32 %s1311, %s1312
        %s1314 = smul.addr %s1313, 4
        %s1315 = scalar_lea.vmem %s6, %s1314
      $region56: #{basic_block_forward.2} parent=51 // pred_fallthru
        _
    $region52: #{basic_block_forward.2} parent=5 // pred_fallthru
      _
  $region6: #{basic_block_forward.2} parent=0 // loop_footer
    %s16 = sadd.s32 1, %s12
  $region7: #{basic_block_forward.2} parent=0 // loop_footer_branch
    %11 = sbr.rel target = $region3
  $region8: #{basic_block_forward.2} parent=0 // loop_exit
    _

</llo_original>
